<compile_context>
chip_gen: v5e
topology: v5e:2x2
jax: 0.10.0
libtpu: 0.0.40
codegen_flags: <defaults>
</compile_context>

<pallas_src>
import functools

import jax
import jax.numpy as jnp
from jax.experimental import pallas as pl
from jax.experimental.pallas import tpu as pltpu


# ----------------------------------------------------------------------------
# Fused kernel: for one (batch, T-tile) block compute all layers + proj + residual + mask.
#   refs layout:
#     [0] x window  (1, 1, Lw, Cin)      Lw = t_tile + 2*halo, halo = n_layers*(K//2)
#     [1] mask win  (1, 1, Lw, 1)
#     [2 .. 2+4L)   per-layer (w_packed (Cin_l, K*H), bias (1,H), gamma (1,H), beta (1,H))
#     [2+4L]        proj_w (H, Cout)
#     [3+4L]        proj_b (1, Cout)
#     [4+4L]        output (1, t_tile, Cout)
# ----------------------------------------------------------------------------
def _fused_kernel(*refs, n_layers, kernel_size, pad, halo, t_tile, eps):
    xw_ref = refs[0]
    mw_ref = refs[1]
    layer_refs = refs[2:2 + 4 * n_layers]
    pw_ref = refs[2 + 4 * n_layers]
    pb_ref = refs[3 + 4 * n_layers]
    o_ref = refs[4 + 4 * n_layers]

    x_win = xw_ref[0, 0]          # (Lw, Cin)  f32, kept for the residual
    m_win = mw_ref[0, 0]          # (Lw, 1)    f32

    # Layer-0 input is masked here; every later layer consumes an already-masked activation
    # because we re-apply the mask at each layer's output below (mathematically identical to
    # the module's per-layer `x * x_mask`, and it also zeroes out-of-range halo rows).
    h = x_win * m_win
    n_hidden = pw_ref.shape[0]
    L = x_win.shape[0]

    for l in range(n_layers):
        w_ref, b_ref, g_ref, be_ref = layer_refs[4 * l: 4 * l + 4]
        L_out = L - 2 * pad

        # Single matmul per layer: (L, Cin_l) @ (Cin_l, K*H) -> (L, K*H), then shift-add
        # the K tap bands (value slices only; no minor-dim concatenation, no scratch stores).
        z = jnp.dot(h.astype(w_ref.dtype), w_ref[...],
                    preferred_element_type=jnp.float32)          # (L, K*H) f32
        acc = z[0:L_out, 0:n_hidden]
        for tap in range(1, kernel_size):
            acc = acc + z[tap:tap + L_out, tap * n_hidden:(tap + 1) * n_hidden]
        acc = acc + b_ref[...]                                    # (L_out, H)

        # LayerNorm over the channel (lane) axis, single-pass statistics, f32.
        inv_n = 1.0 / n_hidden
        s1 = jnp.sum(acc, axis=-1, keepdims=True)
        s2 = jnp.sum(acc * acc, axis=-1, keepdims=True)
        mean = s1 * inv_n
        var = jnp.maximum(s2 * inv_n - mean * mean, 0.0)
        xn = (acc - mean) * jax.lax.rsqrt(var + eps)
        xn = xn * g_ref[...] + be_ref[...]

        h = jnp.maximum(xn, 0.0)                                  # ReLU
        # TODO(synk): dropout is identity here (eval semantics); training-mode dropout would
        # use pltpu.prng_seed / pltpu.prng_random_bits.
        # Mask at the layer output (window rows [(l+1)*pad, (l+1)*pad + L_out)).
        h = h * m_win[(l + 1) * pad:(l + 1) * pad + L_out, :]
        L = L_out

    # Here L == t_tile and h sits at window rows [halo, halo + t_tile).
    y = jnp.dot(h.astype(pw_ref.dtype), pw_ref[...],
                preferred_element_type=jnp.float32) + pb_ref[...]
    x_center = x_win[halo:halo + t_tile, :]
    m_center = m_win[halo:halo + t_tile, :]
    o_ref[0] = ((x_center + y) * m_center).astype(o_ref.dtype)


# ----------------------------------------------------------------------------
# Wrapper (PyTorch-facing: x is NCT (B, C, T), x_mask is (B, 1, T))
# ----------------------------------------------------------------------------
def conv_relu_norm_forward(x_nct, x_mask_n1t, params, *, eps=1e-5, block_t=512,
                           compute_dtype=jnp.float32):
    B, Cin, T = x_nct.shape
    layers = params["layers"]
    n_layers = len(layers)
    K, _, Hid = layers[0][0].shape
    pad = K // 2
    halo = pad * n_layers
    Cout = params["proj_w"].shape[-1]
    assert Cout == Cin, "residual path requires out_channels == in_channels"

    x_btc = jnp.transpose(x_nct, (0, 2, 1)).astype(jnp.float32)        # (B, T, Cin)
    m_bt1 = jnp.transpose(x_mask_n1t, (0, 2, 1)).astype(jnp.float32)   # (B, T, 1)

    # T tiling: tile size is a multiple of 8 sublanes, as large as block_t / T allow.
    t_tile = min(int(block_t), ((T + 7) // 8) * 8)
    t_tile = max(8, (t_tile // 8) * 8)
    nt = pl.cdiv(T, t_tile)
    t_round = nt * t_tile
    lw = t_tile + 2 * halo

    # One zero-pad of the *input* only (no per-layer activation pads), then halo windows so
    # every (b, t) grid step is a self-contained, auto-pipelined block.
    xp = jnp.pad(x_btc, ((0, 0), (halo, halo + t_round - T), (0, 0)))
    mp = jnp.pad(m_bt1, ((0, 0), (halo, halo + t_round - T), (0, 0)))
    x_win = jnp.stack([xp[:, t * t_tile: t * t_tile + lw, :] for t in range(nt)], axis=1)
    m_win = jnp.stack([mp[:, t * t_tile: t * t_tile + lw, :] for t in range(nt)], axis=1)

    # Host-side weight prep: pack the K taps into a single (Cin_l, K*H) matrix per layer.
    flat_params = []
    in_specs = [
        pl.BlockSpec((1, 1, lw, Cin), lambda b, t: (b, t, 0, 0)),
        pl.BlockSpec((1, 1, lw, 1), lambda b, t: (b, t, 0, 0)),
    ]
    for (w, b, g, be) in layers:
        kk, cin_l, hh = w.shape
        w_packed = jnp.transpose(w, (1, 0, 2)).reshape(cin_l, kk * hh).astype(compute_dtype)
        flat_params += [w_packed, b.astype(jnp.float32),
                        g.astype(jnp.float32), be.astype(jnp.float32)]
        in_specs += [
            pl.BlockSpec((cin_l, kk * hh), lambda b_, t_: (0, 0)),
            pl.BlockSpec((1, hh), lambda b_, t_: (0, 0)),
            pl.BlockSpec((1, hh), lambda b_, t_: (0, 0)),
            pl.BlockSpec((1, hh), lambda b_, t_: (0, 0)),
        ]
    proj_w = params["proj_w"].astype(compute_dtype)
    proj_b = params["proj_b"].astype(jnp.float32)
    flat_params += [proj_w, proj_b]
    in_specs += [
        pl.BlockSpec((Hid, Cout), lambda b_, t_: (0, 0)),
        pl.BlockSpec((1, Cout), lambda b_, t_: (0, 0)),
    ]

    kernel = functools.partial(
        _fused_kernel, n_layers=n_layers, kernel_size=K, pad=pad,
        halo=halo, t_tile=t_tile, eps=eps)

    # VMEM budget: double-buffered windows + output tile + weights + in-kernel working set.
    est = (
        2 * 2 * 4 * lw * (Cin + 1)                                   # x & mask windows
        + 2 * 4 * t_tile * Cout                                      # output tile
        + 2 * sum(int(p.size) * p.dtype.itemsize for p in flat_params)
        + 8 * 4 * lw * (K * Hid + 2 * Hid + Cin)                     # z / acc / h values
    )
    vmem_limit = int(min(max(2 * est + (8 << 20), 32 << 20), 48 << 20))

    out = pl.pallas_call(
        kernel,
        out_shape=jax.ShapeDtypeStruct((B, t_round, Cout), jnp.float32),
        grid_spec=pltpu.PrefetchScalarGridSpec(
            num_scalar_prefetch=0,
            grid=(B, nt),
            in_specs=in_specs,
            out_specs=pl.BlockSpec((1, t_tile, Cout), lambda b, t: (b, t, 0)),
        ),
        compiler_params=pltpu.CompilerParams(
            dimension_semantics=("parallel", "parallel"),
            vmem_limit_bytes=vmem_limit,
        ),
    )(x_win, m_win, *flat_params)

    out = out[:, :T, :]
    # TODO(synk): for very small Cout the (t_tile, Cout) stores are not lane-dense; a lane-dense
    # NCT-layout output would need an in-kernel transpose and is left out for robustness.
    return jnp.transpose(out, (0, 2, 1))                             # back to NCT (B, Cout, T)


# ----------------------------------------------------------------------------
# Pure-JAX reference (same math as the PyTorch module) for verification.
# ----------------------------------------------------------------------------
def reference_forward(x_nct, x_mask_n1t, params, eps=1e-5):
    x = jnp.transpose(x_nct, (0, 2, 1))
    m = jnp.transpose(x_mask_n1t, (0, 2, 1))
    x_org = x
    h = x
    for (w, b, g, be) in params["layers"]:
        K = w.shape[0]
        pad = K // 2
        hp = jnp.pad(h * m, ((0, 0), (pad, pad), (0, 0)))
        T = h.shape[1]
        acc = sum(jnp.einsum("btc,ch->bth", hp[:, t:t + T, :], w[t]) for t in range(K)) + b
        mean = jnp.mean(acc, axis=-1, keepdims=True)
        var = jnp.mean(jnp.square(acc - mean), axis=-1, keepdims=True)
        hn = (acc - mean) * jax.lax.rsqrt(var + eps) * g + be
        h = jnp.maximum(hn, 0.0)
    out = (x_org + jnp.einsum("bth,hc->btc", h, params["proj_w"]) + params["proj_b"]) * m
    return jnp.transpose(out, (0, 2, 1))


def make_params(key, in_channels, hidden_channels, out_channels, kernel_size, n_layers,
                zero_proj=True, scale=0.1):
    keys = jax.random.split(key, 2 * n_layers + 2)
    layers = []
    cin = in_channels
    for i in range(n_layers):
        w = scale * jax.random.normal(keys[2 * i], (kernel_size, cin, hidden_channels), jnp.float32)
        b = scale * jax.random.normal(keys[2 * i + 1], (1, hidden_channels), jnp.float32)
        layers.append((w, b,
                       jnp.ones((1, hidden_channels), jnp.float32),
                       jnp.zeros((1, hidden_channels), jnp.float32)))
        cin = hidden_channels
    if zero_proj:   # module zero-inits the projection
        pw = jnp.zeros((hidden_channels, out_channels), jnp.float32)
        pb = jnp.zeros((1, out_channels), jnp.float32)
    else:
        pw = scale * jax.random.normal(keys[-2], (hidden_channels, out_channels), jnp.float32)
        pb = scale * jax.random.normal(keys[-1], (1, out_channels), jnp.float32)
    return {"layers": layers, "proj_w": pw, "proj_b": pb}


if __name__ == "__main__":
    key = jax.random.PRNGKey(0)
    k1, k2, k3, k4, k5 = jax.random.split(key, 5)

    # ---- Test 1: module-faithful config (zero-init proj), single T tile ----
    B, Cin, T, Hid, Cout, K, NL = 2, 4, 16, 32, 4, 3, 3
    params1 = make_params(k1, Cin, Hid, Cout, K, NL, zero_proj=True)
    x1 = jax.random.normal(k2, (B, Cin, T), jnp.float32)
    m1 = (jax.random.uniform(k3, (B, 1, T)) > 0.2).astype(jnp.float32)

    out1 = jax.block_until_ready(conv_relu_norm_forward(x1, m1, params1))
    ref1 = reference_forward(x1, m1, params1)
    assert out1.shape == (B, Cout, T)
    assert jnp.allclose(out1, ref1, atol=1e-4, rtol=1e-4), "test1: mismatch vs reference"
    assert jnp.allclose(out1, x1 * m1, atol=1e-5), "test1: zero-proj residual path mismatch"

    # ---- Test 2: multi-tile T (halo across tiles + padded tail), non-zero proj ----
    B2, T2 = 3, 40
    params2 = make_params(k4, Cin, Hid, Cout, K, NL, zero_proj=False)
    x2 = jax.random.normal(k5, (B2, Cin, T2), jnp.float32)
    m2 = (jax.random.uniform(jax.random.fold_in(k5, 1), (B2, 1, T2)) > 0.3).astype(jnp.float32)

    out2 = jax.block_until_ready(conv_relu_norm_forward(x2, m2, params2, block_t=16))
    ref2 = reference_forward(x2, m2, params2)
    assert jnp.allclose(out2, ref2, atol=1e-4, rtol=1e-4), "test2: mismatch vs reference"

    # ---- Test 3: bf16 matmul inputs (v6e/v7x fast path), f32 LayerNorm/accumulation ----
    out3 = jax.block_until_ready(
        conv_relu_norm_forward(x2, m2, params2, block_t=16, compute_dtype=jnp.bfloat16))
    assert jnp.allclose(out3, ref2, atol=1e-1, rtol=1e-1), "test3: bf16 path mismatch"

    print("KERNEL_OK")
</pallas_src>

<mosaic_0001>
module attributes {stable_mosaic.version = 11 : i64} {
  func.func @_fused_kernel(%arg0: i32, %arg1: i32, %arg2: memref<1x1x22x4xf32, #tpu.memory_space<vmem>>, %arg3: memref<1x1x22x1xf32, #tpu.memory_space<vmem>>, %arg4: memref<4x96xf32, #tpu.memory_space<vmem>>, %arg5: memref<1x32xf32, #tpu.memory_space<vmem>>, %arg6: memref<1x32xf32, #tpu.memory_space<vmem>>, %arg7: memref<1x32xf32, #tpu.memory_space<vmem>>, %arg8: memref<32x96xf32, #tpu.memory_space<vmem>>, %arg9: memref<1x32xf32, #tpu.memory_space<vmem>>, %arg10: memref<1x32xf32, #tpu.memory_space<vmem>>, %arg11: memref<1x32xf32, #tpu.memory_space<vmem>>, %arg12: memref<32x96xf32, #tpu.memory_space<vmem>>, %arg13: memref<1x32xf32, #tpu.memory_space<vmem>>, %arg14: memref<1x32xf32, #tpu.memory_space<vmem>>, %arg15: memref<1x32xf32, #tpu.memory_space<vmem>>, %arg16: memref<32x4xf32, #tpu.memory_space<vmem>>, %arg17: memref<1x4xf32, #tpu.memory_space<vmem>>, %arg18: memref<1x16x4xf32, #tpu.memory_space<vmem>>) attributes {dimension_semantics = [#tpu.dimension_semantics<parallel>, #tpu.dimension_semantics<parallel>], iteration_bounds = array<i64: 2, 1>, scalar_prefetch = 0 : i64, scratch_operands = 0 : i64, tpu.core_type = #tpu.core_type<tc>, window_params = [{transform_indices = @transform_0, window_bounds = array<i64: 1, 1, 22, 4>}, {transform_indices = @transform_1, window_bounds = array<i64: 1, 1, 22, 1>}, {pipeline_mode = #tpu.pipeline_mode<synchronous>, transform_indices = @transform_2, window_bounds = array<i64: 4, 96>}, {pipeline_mode = #tpu.pipeline_mode<synchronous>, transform_indices = @transform_3, window_bounds = array<i64: 1, 32>}, {pipeline_mode = #tpu.pipeline_mode<synchronous>, transform_indices = @transform_4, window_bounds = array<i64: 1, 32>}, {pipeline_mode = #tpu.pipeline_mode<synchronous>, transform_indices = @transform_5, window_bounds = array<i64: 1, 32>}, {pipeline_mode = #tpu.pipeline_mode<synchronous>, transform_indices = @transform_6, window_bounds = array<i64: 32, 96>}, {pipeline_mode = #tpu.pipeline_mode<synchronous>, transform_indices = @transform_7, window_bounds = array<i64: 1, 32>}, {pipeline_mode = #tpu.pipeline_mode<synchronous>, transform_indices = @transform_8, window_bounds = array<i64: 1, 32>}, {pipeline_mode = #tpu.pipeline_mode<synchronous>, transform_indices = @transform_9, window_bounds = array<i64: 1, 32>}, {pipeline_mode = #tpu.pipeline_mode<synchronous>, transform_indices = @transform_10, window_bounds = array<i64: 32, 96>}, {pipeline_mode = #tpu.pipeline_mode<synchronous>, transform_indices = @transform_11, window_bounds = array<i64: 1, 32>}, {pipeline_mode = #tpu.pipeline_mode<synchronous>, transform_indices = @transform_12, window_bounds = array<i64: 1, 32>}, {pipeline_mode = #tpu.pipeline_mode<synchronous>, transform_indices = @transform_13, window_bounds = array<i64: 1, 32>}, {pipeline_mode = #tpu.pipeline_mode<synchronous>, transform_indices = @transform_14, window_bounds = array<i64: 32, 4>}, {pipeline_mode = #tpu.pipeline_mode<synchronous>, transform_indices = @transform_15, window_bounds = array<i64: 1, 4>}, {transform_indices = @transform_16, window_bounds = array<i64: 1, 16, 4>}]} {
    %c0 = arith.constant 0 : index
    %c0_0 = arith.constant 0 : index
    %c0_1 = arith.constant 0 : index
    %c0_2 = arith.constant 0 : index
    %0 = vector.load %arg2[%c0, %c0_0, %c0_1, %c0_2] : memref<1x1x22x4xf32, #tpu.memory_space<vmem>>, vector<1x1x22x4xf32>
    %1 = vector.shape_cast %0 : vector<1x1x22x4xf32> to vector<22x4xf32>
    %c0_3 = arith.constant 0 : index
    %c0_4 = arith.constant 0 : index
    %c0_5 = arith.constant 0 : index
    %c0_6 = arith.constant 0 : index
    %2 = vector.load %arg3[%c0_3, %c0_4, %c0_5, %c0_6] : memref<1x1x22x1xf32, #tpu.memory_space<vmem>>, vector<1x1x22x1xf32>
    %3 = vector.shape_cast %2 : vector<1x1x22x1xf32> to vector<22x1xf32>
    %4 = vector.broadcast %3 : vector<22x1xf32> to vector<22x4xf32>
    %5 = arith.mulf %1, %4 : vector<22x4xf32>
    %c0_7 = arith.constant 0 : index
    %c0_8 = arith.constant 0 : index
    %6 = vector.load %arg4[%c0_7, %c0_8] : memref<4x96xf32, #tpu.memory_space<vmem>>, vector<4x96xf32>
    %cst = arith.constant dense<0.000000e+00> : vector<22x96xf32>
    %7 = tpu.matmul %5, %6, %cst {dimension_numbers = #tpu.dot_dimension_numbers<[1], [0], [0], [1], [0, 0, 1, 1], [], []>} : vector<22x4xf32>, vector<4x96xf32>, vector<22x96xf32> -> vector<22x96xf32>
    %8 = vector.extract_strided_slice %7 {offsets = [0, 0], sizes = [20, 32], strides = [1, 1]} : vector<22x96xf32> to vector<20x32xf32>
    %9 = vector.extract_strided_slice %7 {offsets = [1, 32], sizes = [20, 32], strides = [1, 1]} : vector<22x96xf32> to vector<20x32xf32>
    %10 = arith.addf %8, %9 : vector<20x32xf32>
    %11 = vector.extract_strided_slice %7 {offsets = [2, 64], sizes = [20, 32], strides = [1, 1]} : vector<22x96xf32> to vector<20x32xf32>
    %12 = arith.addf %10, %11 : vector<20x32xf32>
    %c0_9 = arith.constant 0 : index
    %c0_10 = arith.constant 0 : index
    %13 = vector.load %arg5[%c0_9, %c0_10] : memref<1x32xf32, #tpu.memory_space<vmem>>, vector<1x32xf32>
    %14 = vector.broadcast %13 : vector<1x32xf32> to vector<20x32xf32>
    %15 = arith.addf %12, %14 : vector<20x32xf32>
    %cst_11 = arith.constant dense<0.000000e+00> : vector<20xf32>
    %16 = vector.multi_reduction <add>, %15, %cst_11 [1] : vector<20x32xf32> to vector<20xf32>
    %17 = vector.shape_cast %16 : vector<20xf32> to vector<20x1xf32>
    %18 = arith.mulf %15, %15 : vector<20x32xf32>
    %cst_12 = arith.constant dense<0.000000e+00> : vector<20xf32>
    %19 = vector.multi_reduction <add>, %18, %cst_12 [1] : vector<20x32xf32> to vector<20xf32>
    %20 = vector.shape_cast %19 : vector<20xf32> to vector<20x1xf32>
    %cst_13 = arith.constant 3.125000e-02 : f32
    %21 = vector.broadcast %cst_13 : f32 to vector<20x1xf32>
    %22 = arith.mulf %17, %21 : vector<20x1xf32>
    %cst_14 = arith.constant 3.125000e-02 : f32
    %23 = vector.broadcast %cst_14 : f32 to vector<20x1xf32>
    %24 = arith.mulf %20, %23 : vector<20x1xf32>
    %25 = arith.mulf %22, %22 : vector<20x1xf32>
    %26 = arith.subf %24, %25 : vector<20x1xf32>
    %cst_15 = arith.constant 0.000000e+00 : f32
    %27 = vector.broadcast %cst_15 : f32 to vector<20x1xf32>
    %28 = arith.maximumf %26, %27 : vector<20x1xf32>
    %29 = vector.broadcast %22 : vector<20x1xf32> to vector<20x32xf32>
    %30 = arith.subf %15, %29 : vector<20x32xf32>
    %cst_16 = arith.constant 9.99999974E-6 : f32
    %31 = vector.broadcast %cst_16 : f32 to vector<20x1xf32>
    %32 = arith.addf %28, %31 : vector<20x1xf32>
    %33 = math.rsqrt %32 : vector<20x1xf32>
    %34 = vector.broadcast %33 : vector<20x1xf32> to vector<20x32xf32>
    %35 = arith.mulf %30, %34 : vector<20x32xf32>
    %c0_17 = arith.constant 0 : index
    %c0_18 = arith.constant 0 : index
    %36 = vector.load %arg6[%c0_17, %c0_18] : memref<1x32xf32, #tpu.memory_space<vmem>>, vector<1x32xf32>
    %37 = vector.broadcast %36 : vector<1x32xf32> to vector<20x32xf32>
    %38 = arith.mulf %35, %37 : vector<20x32xf32>
    %c0_19 = arith.constant 0 : index
    %c0_20 = arith.constant 0 : index
    %39 = vector.load %arg7[%c0_19, %c0_20] : memref<1x32xf32, #tpu.memory_space<vmem>>, vector<1x32xf32>
    %40 = vector.broadcast %39 : vector<1x32xf32> to vector<20x32xf32>
    %41 = arith.addf %38, %40 : vector<20x32xf32>
    %cst_21 = arith.constant 0.000000e+00 : f32
    %42 = vector.broadcast %cst_21 : f32 to vector<20x32xf32>
    %43 = arith.maximumf %41, %42 : vector<20x32xf32>
    %44 = vector.extract_strided_slice %3 {offsets = [1, 0], sizes = [20, 1], strides = [1, 1]} : vector<22x1xf32> to vector<20x1xf32>
    %45 = vector.broadcast %44 : vector<20x1xf32> to vector<20x32xf32>
    %46 = arith.mulf %43, %45 : vector<20x32xf32>
    %c0_22 = arith.constant 0 : index
    %c0_23 = arith.constant 0 : index
    %47 = vector.load %arg8[%c0_22, %c0_23] : memref<32x96xf32, #tpu.memory_space<vmem>>, vector<32x96xf32>
    %cst_24 = arith.constant dense<0.000000e+00> : vector<20x96xf32>
    %48 = tpu.matmul %46, %47, %cst_24 {dimension_numbers = #tpu.dot_dimension_numbers<[1], [0], [0], [1], [0, 0, 1, 1], [], []>} : vector<20x32xf32>, vector<32x96xf32>, vector<20x96xf32> -> vector<20x96xf32>
    %49 = vector.extract_strided_slice %48 {offsets = [0, 0], sizes = [18, 32], strides = [1, 1]} : vector<20x96xf32> to vector<18x32xf32>
    %50 = vector.extract_strided_slice %48 {offsets = [1, 32], sizes = [18, 32], strides = [1, 1]} : vector<20x96xf32> to vector<18x32xf32>
    %51 = arith.addf %49, %50 : vector<18x32xf32>
    %52 = vector.extract_strided_slice %48 {offsets = [2, 64], sizes = [18, 32], strides = [1, 1]} : vector<20x96xf32> to vector<18x32xf32>
    %53 = arith.addf %51, %52 : vector<18x32xf32>
    %c0_25 = arith.constant 0 : index
    %c0_26 = arith.constant 0 : index
    %54 = vector.load %arg9[%c0_25, %c0_26] : memref<1x32xf32, #tpu.memory_space<vmem>>, vector<1x32xf32>
    %55 = vector.broadcast %54 : vector<1x32xf32> to vector<18x32xf32>
    %56 = arith.addf %53, %55 : vector<18x32xf32>
    %cst_27 = arith.constant dense<0.000000e+00> : vector<18xf32>
    %57 = vector.multi_reduction <add>, %56, %cst_27 [1] : vector<18x32xf32> to vector<18xf32>
    %58 = vector.shape_cast %57 : vector<18xf32> to vector<18x1xf32>
    %59 = arith.mulf %56, %56 : vector<18x32xf32>
    %cst_28 = arith.constant dense<0.000000e+00> : vector<18xf32>
    %60 = vector.multi_reduction <add>, %59, %cst_28 [1] : vector<18x32xf32> to vector<18xf32>
    %61 = vector.shape_cast %60 : vector<18xf32> to vector<18x1xf32>
    %cst_29 = arith.constant 3.125000e-02 : f32
    %62 = vector.broadcast %cst_29 : f32 to vector<18x1xf32>
    %63 = arith.mulf %58, %62 : vector<18x1xf32>
    %cst_30 = arith.constant 3.125000e-02 : f32
    %64 = vector.broadcast %cst_30 : f32 to vector<18x1xf32>
    %65 = arith.mulf %61, %64 : vector<18x1xf32>
    %66 = arith.mulf %63, %63 : vector<18x1xf32>
    %67 = arith.subf %65, %66 : vector<18x1xf32>
    %cst_31 = arith.constant 0.000000e+00 : f32
    %68 = vector.broadcast %cst_31 : f32 to vector<18x1xf32>
    %69 = arith.maximumf %67, %68 : vector<18x1xf32>
    %70 = vector.broadcast %63 : vector<18x1xf32> to vector<18x32xf32>
    %71 = arith.subf %56, %70 : vector<18x32xf32>
    %cst_32 = arith.constant 9.99999974E-6 : f32
    %72 = vector.broadcast %cst_32 : f32 to vector<18x1xf32>
    %73 = arith.addf %69, %72 : vector<18x1xf32>
    %74 = math.rsqrt %73 : vector<18x1xf32>
    %75 = vector.broadcast %74 : vector<18x1xf32> to vector<18x32xf32>
    %76 = arith.mulf %71, %75 : vector<18x32xf32>
    %c0_33 = arith.constant 0 : index
    %c0_34 = arith.constant 0 : index
    %77 = vector.load %arg10[%c0_33, %c0_34] : memref<1x32xf32, #tpu.memory_space<vmem>>, vector<1x32xf32>
    %78 = vector.broadcast %77 : vector<1x32xf32> to vector<18x32xf32>
    %79 = arith.mulf %76, %78 : vector<18x32xf32>
    %c0_35 = arith.constant 0 : index
    %c0_36 = arith.constant 0 : index
    %80 = vector.load %arg11[%c0_35, %c0_36] : memref<1x32xf32, #tpu.memory_space<vmem>>, vector<1x32xf32>
    %81 = vector.broadcast %80 : vector<1x32xf32> to vector<18x32xf32>
    %82 = arith.addf %79, %81 : vector<18x32xf32>
    %cst_37 = arith.constant 0.000000e+00 : f32
    %83 = vector.broadcast %cst_37 : f32 to vector<18x32xf32>
    %84 = arith.maximumf %82, %83 : vector<18x32xf32>
    %85 = vector.extract_strided_slice %3 {offsets = [2, 0], sizes = [18, 1], strides = [1, 1]} : vector<22x1xf32> to vector<18x1xf32>
    %86 = vector.broadcast %85 : vector<18x1xf32> to vector<18x32xf32>
    %87 = arith.mulf %84, %86 : vector<18x32xf32>
    %c0_38 = arith.constant 0 : index
    %c0_39 = arith.constant 0 : index
    %88 = vector.load %arg12[%c0_38, %c0_39] : memref<32x96xf32, #tpu.memory_space<vmem>>, vector<32x96xf32>
    %cst_40 = arith.constant dense<0.000000e+00> : vector<18x96xf32>
    %89 = tpu.matmul %87, %88, %cst_40 {dimension_numbers = #tpu.dot_dimension_numbers<[1], [0], [0], [1], [0, 0, 1, 1], [], []>} : vector<18x32xf32>, vector<32x96xf32>, vector<18x96xf32> -> vector<18x96xf32>
    %90 = vector.extract_strided_slice %89 {offsets = [0, 0], sizes = [16, 32], strides = [1, 1]} : vector<18x96xf32> to vector<16x32xf32>
    %91 = vector.extract_strided_slice %89 {offsets = [1, 32], sizes = [16, 32], strides = [1, 1]} : vector<18x96xf32> to vector<16x32xf32>
    %92 = arith.addf %90, %91 : vector<16x32xf32>
    %93 = vector.extract_strided_slice %89 {offsets = [2, 64], sizes = [16, 32], strides = [1, 1]} : vector<18x96xf32> to vector<16x32xf32>
    %94 = arith.addf %92, %93 : vector<16x32xf32>
    %c0_41 = arith.constant 0 : index
    %c0_42 = arith.constant 0 : index
    %95 = vector.load %arg13[%c0_41, %c0_42] : memref<1x32xf32, #tpu.memory_space<vmem>>, vector<1x32xf32>
    %96 = vector.broadcast %95 : vector<1x32xf32> to vector<16x32xf32>
    %97 = arith.addf %94, %96 : vector<16x32xf32>
    %cst_43 = arith.constant dense<0.000000e+00> : vector<16xf32>
    %98 = vector.multi_reduction <add>, %97, %cst_43 [1] : vector<16x32xf32> to vector<16xf32>
    %99 = vector.shape_cast %98 : vector<16xf32> to vector<16x1xf32>
    %100 = arith.mulf %97, %97 : vector<16x32xf32>
    %cst_44 = arith.constant dense<0.000000e+00> : vector<16xf32>
    %101 = vector.multi_reduction <add>, %100, %cst_44 [1] : vector<16x32xf32> to vector<16xf32>
    %102 = vector.shape_cast %101 : vector<16xf32> to vector<16x1xf32>
    %cst_45 = arith.constant 3.125000e-02 : f32
    %103 = vector.broadcast %cst_45 : f32 to vector<16x1xf32>
    %104 = arith.mulf %99, %103 : vector<16x1xf32>
    %cst_46 = arith.constant 3.125000e-02 : f32
    %105 = vector.broadcast %cst_46 : f32 to vector<16x1xf32>
    %106 = arith.mulf %102, %105 : vector<16x1xf32>
    %107 = arith.mulf %104, %104 : vector<16x1xf32>
    %108 = arith.subf %106, %107 : vector<16x1xf32>
    %cst_47 = arith.constant 0.000000e+00 : f32
    %109 = vector.broadcast %cst_47 : f32 to vector<16x1xf32>
    %110 = arith.maximumf %108, %109 : vector<16x1xf32>
    %111 = vector.broadcast %104 : vector<16x1xf32> to vector<16x32xf32>
    %112 = arith.subf %97, %111 : vector<16x32xf32>
    %cst_48 = arith.constant 9.99999974E-6 : f32
    %113 = vector.broadcast %cst_48 : f32 to vector<16x1xf32>
    %114 = arith.addf %110, %113 : vector<16x1xf32>
    %115 = math.rsqrt %114 : vector<16x1xf32>
    %116 = vector.broadcast %115 : vector<16x1xf32> to vector<16x32xf32>
    %117 = arith.mulf %112, %116 : vector<16x32xf32>
    %c0_49 = arith.constant 0 : index
    %c0_50 = arith.constant 0 : index
    %118 = vector.load %arg14[%c0_49, %c0_50] : memref<1x32xf32, #tpu.memory_space<vmem>>, vector<1x32xf32>
    %119 = vector.broadcast %118 : vector<1x32xf32> to vector<16x32xf32>
    %120 = arith.mulf %117, %119 : vector<16x32xf32>
    %c0_51 = arith.constant 0 : index
    %c0_52 = arith.constant 0 : index
    %121 = vector.load %arg15[%c0_51, %c0_52] : memref<1x32xf32, #tpu.memory_space<vmem>>, vector<1x32xf32>
    %122 = vector.broadcast %121 : vector<1x32xf32> to vector<16x32xf32>
    %123 = arith.addf %120, %122 : vector<16x32xf32>
    %cst_53 = arith.constant 0.000000e+00 : f32
    %124 = vector.broadcast %cst_53 : f32 to vector<16x32xf32>
    %125 = arith.maximumf %123, %124 : vector<16x32xf32>
    %126 = vector.extract_strided_slice %3 {offsets = [3, 0], sizes = [16, 1], strides = [1, 1]} : vector<22x1xf32> to vector<16x1xf32>
    %127 = vector.broadcast %126 : vector<16x1xf32> to vector<16x32xf32>
    %128 = arith.mulf %125, %127 : vector<16x32xf32>
    %c0_54 = arith.constant 0 : index
    %c0_55 = arith.constant 0 : index
    %129 = vector.load %arg16[%c0_54, %c0_55] : memref<32x4xf32, #tpu.memory_space<vmem>>, vector<32x4xf32>
    %cst_56 = arith.constant dense<0.000000e+00> : vector<16x4xf32>
    %130 = tpu.matmul %128, %129, %cst_56 {dimension_numbers = #tpu.dot_dimension_numbers<[1], [0], [0], [1], [0, 0, 1, 1], [], []>} : vector<16x32xf32>, vector<32x4xf32>, vector<16x4xf32> -> vector<16x4xf32>
    %c0_57 = arith.constant 0 : index
    %c0_58 = arith.constant 0 : index
    %131 = vector.load %arg17[%c0_57, %c0_58] : memref<1x4xf32, #tpu.memory_space<vmem>>, vector<1x4xf32>
    %132 = vector.broadcast %131 : vector<1x4xf32> to vector<16x4xf32>
    %133 = arith.addf %130, %132 : vector<16x4xf32>
    %134 = vector.extract_strided_slice %1 {offsets = [3, 0], sizes = [16, 4], strides = [1, 1]} : vector<22x4xf32> to vector<16x4xf32>
    %135 = vector.extract_strided_slice %3 {offsets = [3, 0], sizes = [16, 1], strides = [1, 1]} : vector<22x1xf32> to vector<16x1xf32>
    %136 = arith.addf %134, %133 : vector<16x4xf32>
    %137 = vector.broadcast %135 : vector<16x1xf32> to vector<16x4xf32>
    %138 = arith.mulf %136, %137 : vector<16x4xf32>
    %c0_59 = arith.constant 0 : index
    %c0_60 = arith.constant 0 : index
    %c0_61 = arith.constant 0 : index
    %139 = vector.load %arg18[%c0_59, %c0_60, %c0_61] : memref<1x16x4xf32, #tpu.memory_space<vmem>>, vector<1x16x4xf32>
    %140 = vector.shape_cast %139 : vector<1x16x4xf32> to vector<16x4xf32>
    %141 = vector.shape_cast %138 : vector<16x4xf32> to vector<1x16x4xf32>
    tpu.vector_store %arg18[%c0_59, %c0_60, %c0_61], %141 {strides = array<i32>} : memref<1x16x4xf32, #tpu.memory_space<vmem>>, vector<1x16x4xf32>,
    return
  }
  func.func @transform_0(%arg0: i32, %arg1: i32) -> (i32, i32, i32, i32) {
    %c0_i32 = arith.constant 0 : i32
    %c0_i32_0 = arith.constant 0 : i32
    %c0_i32_1 = arith.constant 0 : i32
    return %arg0, %arg1, %c0_i32, %c0_i32_0 : i32, i32, i32, i32
  }
  func.func @transform_1(%arg0: i32, %arg1: i32) -> (i32, i32, i32, i32) {
    %c0_i32 = arith.constant 0 : i32
    %c0_i32_0 = arith.constant 0 : i32
    %c0_i32_1 = arith.constant 0 : i32
    return %arg0, %arg1, %c0_i32, %c0_i32_0 : i32, i32, i32, i32
  }
  func.func @transform_2(%arg0: i32, %arg1: i32) -> (i32, i32) {
    %c0_i32 = arith.constant 0 : i32
    %c0_i32_0 = arith.constant 0 : i32
    %c0_i32_1 = arith.constant 0 : i32
    return %c0_i32, %c0_i32_0 : i32, i32
  }
  func.func @transform_3(%arg0: i32, %arg1: i32) -> (i32, i32) {
    %c0_i32 = arith.constant 0 : i32
    %c0_i32_0 = arith.constant 0 : i32
    %c0_i32_1 = arith.constant 0 : i32
    return %c0_i32, %c0_i32_0 : i32, i32
  }
  func.func @transform_4(%arg0: i32, %arg1: i32) -> (i32, i32) {
    %c0_i32 = arith.constant 0 : i32
    %c0_i32_0 = arith.constant 0 : i32
    %c0_i32_1 = arith.constant 0 : i32
    return %c0_i32, %c0_i32_0 : i32, i32
  }
  func.func @transform_5(%arg0: i32, %arg1: i32) -> (i32, i32) {
    %c0_i32 = arith.constant 0 : i32
    %c0_i32_0 = arith.constant 0 : i32
    %c0_i32_1 = arith.constant 0 : i32
    return %c0_i32, %c0_i32_0 : i32, i32
  }
  func.func @transform_6(%arg0: i32, %arg1: i32) -> (i32, i32) {
    %c0_i32 = arith.constant 0 : i32
    %c0_i32_0 = arith.constant 0 : i32
    %c0_i32_1 = arith.constant 0 : i32
    return %c0_i32, %c0_i32_0 : i32, i32
  }
  func.func @transform_7(%arg0: i32, %arg1: i32) -> (i32, i32) {
    %c0_i32 = arith.constant 0 : i32
    %c0_i32_0 = arith.constant 0 : i32
    %c0_i32_1 = arith.constant 0 : i32
    return %c0_i32, %c0_i32_0 : i32, i32
  }
  func.func @transform_8(%arg0: i32, %arg1: i32) -> (i32, i32) {
    %c0_i32 = arith.constant 0 : i32
    %c0_i32_0 = arith.constant 0 : i32
    %c0_i32_1 = arith.constant 0 : i32
    return %c0_i32, %c0_i32_0 : i32, i32
  }
  func.func @transform_9(%arg0: i32, %arg1: i32) -> (i32, i32) {
    %c0_i32 = arith.constant 0 : i32
    %c0_i32_0 = arith.constant 0 : i32
    %c0_i32_1 = arith.constant 0 : i32
    return %c0_i32, %c0_i32_0 : i32, i32
  }
  func.func @transform_10(%arg0: i32, %arg1: i32) -> (i32, i32) {
    %c0_i32 = arith.constant 0 : i32
    %c0_i32_0 = arith.constant 0 : i32
    %c0_i32_1 = arith.constant 0 : i32
    return %c0_i32, %c0_i32_0 : i32, i32
  }
  func.func @transform_11(%arg0: i32, %arg1: i32) -> (i32, i32) {
    %c0_i32 = arith.constant 0 : i32
    %c0_i32_0 = arith.constant 0 : i32
    %c0_i32_1 = arith.constant 0 : i32
    return %c0_i32, %c0_i32_0 : i32, i32
  }
  func.func @transform_12(%arg0: i32, %arg1: i32) -> (i32, i32) {
    %c0_i32 = arith.constant 0 : i32
    %c0_i32_0 = arith.constant 0 : i32
    %c0_i32_1 = arith.constant 0 : i32
    return %c0_i32, %c0_i32_0 : i32, i32
  }
  func.func @transform_13(%arg0: i32, %arg1: i32) -> (i32, i32) {
    %c0_i32 = arith.constant 0 : i32
    %c0_i32_0 = arith.constant 0 : i32
    %c0_i32_1 = arith.constant 0 : i32
    return %c0_i32, %c0_i32_0 : i32, i32
  }
  func.func @transform_14(%arg0: i32, %arg1: i32) -> (i32, i32) {
    %c0_i32 = arith.constant 0 : i32
    %c0_i32_0 = arith.constant 0 : i32
    %c0_i32_1 = arith.constant 0 : i32
    return %c0_i32, %c0_i32_0 : i32, i32
  }
  func.func @transform_15(%arg0: i32, %arg1: i32) -> (i32, i32) {
    %c0_i32 = arith.constant 0 : i32
    %c0_i32_0 = arith.constant 0 : i32
    %c0_i32_1 = arith.constant 0 : i32
    return %c0_i32, %c0_i32_0 : i32, i32
  }
  func.func @transform_16(%arg0: i32, %arg1: i32) -> (i32, i32, i32) {
    %c0_i32 = arith.constant 0 : i32
    %c0_i32_0 = arith.constant 0 : i32
    return %arg0, %arg1, %c0_i32 : i32, i32, i32
  }
}

</mosaic_0001>

<llo_original>
// kernel: tpu_custom_call.1
$region0: #{tpu_custom_call.1}
  #allocation0 [shape = 'u32[]', space=smem, size = 0x4, offset = 0x4, fixed_abs, tag = 'smem constant byte address 0x4 - core index']
  #allocation1 [shape = 'u32[72,128]{1,0:T(1,128)}', space=vmem, size = 0x9000, scoped, tag = 'internal scratch']
  %s0 = inlined_call_operand.vmem [shape: f32[2,1,22,4], index: 0, kind: input, shape index: {}]
  %s1 = inlined_call_operand.vmem [shape: f32[2,1,22,1], index: 1, kind: input, shape index: {}]
  %s2 = inlined_call_operand.vmem [shape: f32[4,96], index: 2, kind: input, shape index: {}]
  %s3 = inlined_call_operand.vmem [shape: f32[1,32], index: 3, kind: input, shape index: {}]
  %s4 = inlined_call_operand.vmem [shape: f32[1,32], index: 4, kind: input, shape index: {}]
  %s5 = inlined_call_operand.vmem [shape: f32[1,32], index: 5, kind: input, shape index: {}]
  %s6 = inlined_call_operand.vmem [shape: f32[32,96], index: 6, kind: input, shape index: {}]
  %s7 = inlined_call_operand.vmem [shape: f32[1,32], index: 7, kind: input, shape index: {}]
  %s8 = inlined_call_operand.vmem [shape: f32[1,32], index: 8, kind: input, shape index: {}]
  %s9 = inlined_call_operand.vmem [shape: f32[1,32], index: 9, kind: input, shape index: {}]
  %s10 = inlined_call_operand.vmem [shape: f32[32,96], index: 10, kind: input, shape index: {}]
  %s11 = inlined_call_operand.vmem [shape: f32[1,32], index: 11, kind: input, shape index: {}]
  %s12 = inlined_call_operand.vmem [shape: f32[1,32], index: 12, kind: input, shape index: {}]
  %s13 = inlined_call_operand.vmem [shape: f32[1,32], index: 13, kind: input, shape index: {}]
  %s14 = inlined_call_operand.vmem [shape: f32[32,4], index: 14, kind: input, shape index: {}]
  %s15 = inlined_call_operand.vmem [shape: f32[1,4], index: 15, kind: input, shape index: {}]
  %s16 = inlined_call_operand.vmem [shape: f32[2,16,4], index: 16, kind: output, shape index: {}]
  %s17 = sld [smem:[#allocation0]]
  $region97: #{tpu_custom_call.1} parent=0
    _
  %s19 = ssub.s32 1, %s17
  %s20 = scalar_select 0, %s19, %s17
  loop: start=0, step=1, limit=4
  $region2: #{tpu_custom_call.1} parent=0 // loop_pre_header
    _
  $region3: #{tpu_custom_call.1} parent=0 // loop_header
    %s22 = sphi 0, %s26
    %p23 = scmp.ge.s32.totalorder %s22, 4
    %s29 = sphi 0, %s41
    %s30 = sphi 0, %s37
    %s31 = sphi 0, %s29
    %s32 = sphi 0, %s30
    %s33 = sphi 0, %s31
    %s34 = sphi 0, %s32
    %s46 = sphi 0, %s48
    %s49 = sphi 0, %s46
    %s50 = sphi 0, %s49
    %s66 = sphi 0, %s50
    %s74 = sphi 0, %s76
    %s77 = sphi 0, %s74
    %s78 = sphi 0, %s77
    %s94 = sphi 0, %s78
    %s98 = sphi 0, %s98
    %s100 = sphi 0, %s98
    %s101 = sphi 0, %s100
    %s115 = sphi 0, %s101
    %s119 = sphi 0, %s119
    %s121 = sphi 0, %s119
    %s122 = sphi 0, %s121
    %s136 = sphi 0, %s122
    %s140 = sphi 0, %s140
    %s142 = sphi 0, %s140
    %s143 = sphi 0, %s142
    %s157 = sphi 0, %s143
    %s161 = sphi 0, %s161
    %s163 = sphi 0, %s161
    %s164 = sphi 0, %s163
    %s178 = sphi 0, %s164
    %s182 = sphi 0, %s182
    %s184 = sphi 0, %s182
    %s185 = sphi 0, %s184
    %s199 = sphi 0, %s185
    %s203 = sphi 0, %s203
    %s205 = sphi 0, %s203
    %s206 = sphi 0, %s205
    %s220 = sphi 0, %s206
    %s224 = sphi 0, %s224
    %s226 = sphi 0, %s224
    %s227 = sphi 0, %s226
    %s241 = sphi 0, %s227
    %s245 = sphi 0, %s245
    %s247 = sphi 0, %s245
    %s248 = sphi 0, %s247
    %s262 = sphi 0, %s248
    %s266 = sphi 0, %s266
    %s268 = sphi 0, %s266
    %s269 = sphi 0, %s268
    %s283 = sphi 0, %s269
    %s287 = sphi 0, %s287
    %s289 = sphi 0, %s287
    %s290 = sphi 0, %s289
    %s304 = sphi 0, %s290
    %s308 = sphi 0, %s308
    %s310 = sphi 0, %s308
    %s311 = sphi 0, %s310
    %s325 = sphi 0, %s311
    %s329 = sphi 0, %s329
    %s331 = sphi 0, %s329
    %s332 = sphi 0, %s331
    %s346 = sphi 0, %s332
    %s350 = sphi 0, %s350
    %s352 = sphi 0, %s350
    %s353 = sphi 0, %s352
    %s367 = sphi 0, %s353
    %s371 = sphi 0, %s371
    %s373 = sphi 0, %s371
    %s374 = sphi 0, %s373
    %s388 = sphi 0, %s374
    %s396 = sphi 0, %s398
    %s399 = sphi 0, %s396
    %s400 = sphi 0, %s399
    %s416 = sphi 0, %s400
  $region4: #{tpu_custom_call.1} parent=0 // loop_header_branch
    %25 = sbr.rel (%p23) target = $region8
  $region5: #{tpu_custom_call.1} parent=0 // loop_body
    %s27 = ssub.s32 %s22, 1
    %s28 = ssub.s32 %s22, 2
    %s35 = sadd.s32 1, %s30
    %p36 = scmp.ge.s32.totalorder %s35, 1
    %s37 = scalar_select %p36, 0, %s35
    %s38 = sadd.s32 1, %s29
    %s39 = scalar_select %p36, %s38, %s29
    %p40 = scmp.ge.s32.totalorder %s39, 2
    %s41 = scalar_select %p40, 0, %s39
    %s42 = ssub.s32 %s29, %s41
    %s43 = ssub.s32 %s30, %s37
    %s44 = sor.u32 %s42, %s43
    %p45 = scmp.eq.s32.totalorder %s44, 0
    %s47 = sadd.s32 %s46, 1
    %s48 = scalar_select %p45, %s46, %s47
    %p51 = pneg %p45
    %p52 = scmp.eq.s32.totalorder %s22, 1
    %p53 = por %p51, %p52
    %p54 = scmp.ne.s32.totalorder %s46, %s49
    %p55 = scmp.eq.s32.totalorder %s22, 0
    %p56 = por %p54, %p55
    %p57 = scmp.ne.s32.totalorder %s46, %s49
    %p58 = scmp.eq.s32.totalorder %s27, 1
    %p59 = por %p57, %p58
    %p60 = scmp.ne.s32.totalorder %s49, %s50
    %p61 = scmp.eq.s32.totalorder %s27, 0
    %p62 = por %p60, %p61
    %p63 = scmp.ne.s32.totalorder %s49, %s50
    %p64 = scmp.eq.s32.totalorder %s28, 1
    %p65 = por %p63, %p64
    %p67 = scmp.ne.s32.totalorder %s50, %s66
    %p68 = scmp.eq.s32.totalorder %s28, 0
    %p69 = por %p67, %p68
    %s70 = ssub.s32 %s29, %s41
    %s71 = ssub.s32 %s30, %s37
    %s72 = sor.u32 %s70, %s71
    %p73 = scmp.eq.s32.totalorder %s72, 0
    %s75 = sadd.s32 %s74, 1
    %s76 = scalar_select %p73, %s74, %s75
    %p79 = pneg %p73
    %p80 = scmp.eq.s32.totalorder %s22, 1
    %p81 = por %p79, %p80
    %p82 = scmp.ne.s32.totalorder %s74, %s77
    %p83 = scmp.eq.s32.totalorder %s22, 0
    %p84 = por %p82, %p83
    %p85 = scmp.ne.s32.totalorder %s74, %s77
    %p86 = scmp.eq.s32.totalorder %s27, 1
    %p87 = por %p85, %p86
    %p88 = scmp.ne.s32.totalorder %s77, %s78
    %p89 = scmp.eq.s32.totalorder %s27, 0
    %p90 = por %p88, %p89
    %p91 = scmp.ne.s32.totalorder %s77, %s78
    %p92 = scmp.eq.s32.totalorder %s28, 1
    %p93 = por %p91, %p92
    %p95 = scmp.ne.s32.totalorder %s78, %s94
    %p96 = scmp.eq.s32.totalorder %s28, 0
    %p97 = por %p95, %p96
    %s99 = sadd.s32 %s98, 1
    %p102 = scmp.eq.s32.totalorder %s22, 1
    %p103 = scmp.ne.s32.totalorder %s98, %s100
    %p104 = scmp.eq.s32.totalorder %s22, 0
    %p105 = por %p103, %p104
    %p106 = scmp.ne.s32.totalorder %s98, %s100
    %p107 = scmp.eq.s32.totalorder %s27, 1
    %p108 = por %p106, %p107
    %p109 = scmp.ne.s32.totalorder %s100, %s101
    %p110 = scmp.eq.s32.totalorder %s27, 0
    %p111 = por %p109, %p110
    %p112 = scmp.ne.s32.totalorder %s100, %s101
    %p113 = scmp.eq.s32.totalorder %s28, 1
    %p114 = por %p112, %p113
    %p116 = scmp.ne.s32.totalorder %s101, %s115
    %p117 = scmp.eq.s32.totalorder %s28, 0
    %p118 = por %p116, %p117
    %s120 = sadd.s32 %s119, 1
    %p123 = scmp.eq.s32.totalorder %s22, 1
    %p124 = scmp.ne.s32.totalorder %s119, %s121
    %p125 = scmp.eq.s32.totalorder %s22, 0
    %p126 = por %p124, %p125
    %p127 = scmp.ne.s32.totalorder %s119, %s121
    %p128 = scmp.eq.s32.totalorder %s27, 1
    %p129 = por %p127, %p128
    %p130 = scmp.ne.s32.totalorder %s121, %s122
    %p131 = scmp.eq.s32.totalorder %s27, 0
    %p132 = por %p130, %p131
    %p133 = scmp.ne.s32.totalorder %s121, %s122
    %p134 = scmp.eq.s32.totalorder %s28, 1
    %p135 = por %p133, %p134
    %p137 = scmp.ne.s32.totalorder %s122, %s136
    %p138 = scmp.eq.s32.totalorder %s28, 0
    %p139 = por %p137, %p138
    %s141 = sadd.s32 %s140, 1
    %p144 = scmp.eq.s32.totalorder %s22, 1
    %p145 = scmp.ne.s32.totalorder %s140, %s142
    %p146 = scmp.eq.s32.totalorder %s22, 0
    %p147 = por %p145, %p146
    %p148 = scmp.ne.s32.totalorder %s140, %s142
    %p149 = scmp.eq.s32.totalorder %s27, 1
    %p150 = por %p148, %p149
    %p151 = scmp.ne.s32.totalorder %s142, %s143
    %p152 = scmp.eq.s32.totalorder %s27, 0
    %p153 = por %p151, %p152
    %p154 = scmp.ne.s32.totalorder %s142, %s143
    %p155 = scmp.eq.s32.totalorder %s28, 1
    %p156 = por %p154, %p155
    %p158 = scmp.ne.s32.totalorder %s143, %s157
    %p159 = scmp.eq.s32.totalorder %s28, 0
    %p160 = por %p158, %p159
    %s162 = sadd.s32 %s161, 1
    %p165 = scmp.eq.s32.totalorder %s22, 1
    %p166 = scmp.ne.s32.totalorder %s161, %s163
    %p167 = scmp.eq.s32.totalorder %s22, 0
    %p168 = por %p166, %p167
    %p169 = scmp.ne.s32.totalorder %s161, %s163
    %p170 = scmp.eq.s32.totalorder %s27, 1
    %p171 = por %p169, %p170
    %p172 = scmp.ne.s32.totalorder %s163, %s164
    %p173 = scmp.eq.s32.totalorder %s27, 0
    %p174 = por %p172, %p173
    %p175 = scmp.ne.s32.totalorder %s163, %s164
    %p176 = scmp.eq.s32.totalorder %s28, 1
    %p177 = por %p175, %p176
    %p179 = scmp.ne.s32.totalorder %s164, %s178
    %p180 = scmp.eq.s32.totalorder %s28, 0
    %p181 = por %p179, %p180
    %s183 = sadd.s32 %s182, 1
    %p186 = scmp.eq.s32.totalorder %s22, 1
    %p187 = scmp.ne.s32.totalorder %s182, %s184
    %p188 = scmp.eq.s32.totalorder %s22, 0
    %p189 = por %p187, %p188
    %p190 = scmp.ne.s32.totalorder %s182, %s184
    %p191 = scmp.eq.s32.totalorder %s27, 1
    %p192 = por %p190, %p191
    %p193 = scmp.ne.s32.totalorder %s184, %s185
    %p194 = scmp.eq.s32.totalorder %s27, 0
    %p195 = por %p193, %p194
    %p196 = scmp.ne.s32.totalorder %s184, %s185
    %p197 = scmp.eq.s32.totalorder %s28, 1
    %p198 = por %p196, %p197
    %p200 = scmp.ne.s32.totalorder %s185, %s199
    %p201 = scmp.eq.s32.totalorder %s28, 0
    %p202 = por %p200, %p201
    %s204 = sadd.s32 %s203, 1
    %p207 = scmp.eq.s32.totalorder %s22, 1
    %p208 = scmp.ne.s32.totalorder %s203, %s205
    %p209 = scmp.eq.s32.totalorder %s22, 0
    %p210 = por %p208, %p209
    %p211 = scmp.ne.s32.totalorder %s203, %s205
    %p212 = scmp.eq.s32.totalorder %s27, 1
    %p213 = por %p211, %p212
    %p214 = scmp.ne.s32.totalorder %s205, %s206
    %p215 = scmp.eq.s32.totalorder %s27, 0
    %p216 = por %p214, %p215
    %p217 = scmp.ne.s32.totalorder %s205, %s206
    %p218 = scmp.eq.s32.totalorder %s28, 1
    %p219 = por %p217, %p218
    %p221 = scmp.ne.s32.totalorder %s206, %s220
    %p222 = scmp.eq.s32.totalorder %s28, 0
    %p223 = por %p221, %p222
    %s225 = sadd.s32 %s224, 1
    %p228 = scmp.eq.s32.totalorder %s22, 1
    %p229 = scmp.ne.s32.totalorder %s224, %s226
    %p230 = scmp.eq.s32.totalorder %s22, 0
    %p231 = por %p229, %p230
    %p232 = scmp.ne.s32.totalorder %s224, %s226
    %p233 = scmp.eq.s32.totalorder %s27, 1
    %p234 = por %p232, %p233
    %p235 = scmp.ne.s32.totalorder %s226, %s227
    %p236 = scmp.eq.s32.totalorder %s27, 0
    %p237 = por %p235, %p236
    %p238 = scmp.ne.s32.totalorder %s226, %s227
    %p239 = scmp.eq.s32.totalorder %s28, 1
    %p240 = por %p238, %p239
    %p242 = scmp.ne.s32.totalorder %s227, %s241
    %p243 = scmp.eq.s32.totalorder %s28, 0
    %p244 = por %p242, %p243
    %s246 = sadd.s32 %s245, 1
    %p249 = scmp.eq.s32.totalorder %s22, 1
    %p250 = scmp.ne.s32.totalorder %s245, %s247
    %p251 = scmp.eq.s32.totalorder %s22, 0
    %p252 = por %p250, %p251
    %p253 = scmp.ne.s32.totalorder %s245, %s247
    %p254 = scmp.eq.s32.totalorder %s27, 1
    %p255 = por %p253, %p254
    %p256 = scmp.ne.s32.totalorder %s247, %s248
    %p257 = scmp.eq.s32.totalorder %s27, 0
    %p258 = por %p256, %p257
    %p259 = scmp.ne.s32.totalorder %s247, %s248
    %p260 = scmp.eq.s32.totalorder %s28, 1
    %p261 = por %p259, %p260
    %p263 = scmp.ne.s32.totalorder %s248, %s262
    %p264 = scmp.eq.s32.totalorder %s28, 0
    %p265 = por %p263, %p264
    %s267 = sadd.s32 %s266, 1
    %p270 = scmp.eq.s32.totalorder %s22, 1
    %p271 = scmp.ne.s32.totalorder %s266, %s268
    %p272 = scmp.eq.s32.totalorder %s22, 0
    %p273 = por %p271, %p272
    %p274 = scmp.ne.s32.totalorder %s266, %s268
    %p275 = scmp.eq.s32.totalorder %s27, 1
    %p276 = por %p274, %p275
    %p277 = scmp.ne.s32.totalorder %s268, %s269
    %p278 = scmp.eq.s32.totalorder %s27, 0
    %p279 = por %p277, %p278
    %p280 = scmp.ne.s32.totalorder %s268, %s269
    %p281 = scmp.eq.s32.totalorder %s28, 1
    %p282 = por %p280, %p281
    %p284 = scmp.ne.s32.totalorder %s269, %s283
    %p285 = scmp.eq.s32.totalorder %s28, 0
    %p286 = por %p284, %p285
    %s288 = sadd.s32 %s287, 1
    %p291 = scmp.eq.s32.totalorder %s22, 1
    %p292 = scmp.ne.s32.totalorder %s287, %s289
    %p293 = scmp.eq.s32.totalorder %s22, 0
    %p294 = por %p292, %p293
    %p295 = scmp.ne.s32.totalorder %s287, %s289
    %p296 = scmp.eq.s32.totalorder %s27, 1
    %p297 = por %p295, %p296
    %p298 = scmp.ne.s32.totalorder %s289, %s290
    %p299 = scmp.eq.s32.totalorder %s27, 0
    %p300 = por %p298, %p299
    %p301 = scmp.ne.s32.totalorder %s289, %s290
    %p302 = scmp.eq.s32.totalorder %s28, 1
    %p303 = por %p301, %p302
    %p305 = scmp.ne.s32.totalorder %s290, %s304
    %p306 = scmp.eq.s32.totalorder %s28, 0
    %p307 = por %p305, %p306
    %s309 = sadd.s32 %s308, 1
    %p312 = scmp.eq.s32.totalorder %s22, 1
    %p313 = scmp.ne.s32.totalorder %s308, %s310
    %p314 = scmp.eq.s32.totalorder %s22, 0
    %p315 = por %p313, %p314
    %p316 = scmp.ne.s32.totalorder %s308, %s310
    %p317 = scmp.eq.s32.totalorder %s27, 1
    %p318 = por %p316, %p317
    %p319 = scmp.ne.s32.totalorder %s310, %s311
    %p320 = scmp.eq.s32.totalorder %s27, 0
    %p321 = por %p319, %p320
    %p322 = scmp.ne.s32.totalorder %s310, %s311
    %p323 = scmp.eq.s32.totalorder %s28, 1
    %p324 = por %p322, %p323
    %p326 = scmp.ne.s32.totalorder %s311, %s325
    %p327 = scmp.eq.s32.totalorder %s28, 0
    %p328 = por %p326, %p327
    %s330 = sadd.s32 %s329, 1
    %p333 = scmp.eq.s32.totalorder %s22, 1
    %p334 = scmp.ne.s32.totalorder %s329, %s331
    %p335 = scmp.eq.s32.totalorder %s22, 0
    %p336 = por %p334, %p335
    %p337 = scmp.ne.s32.totalorder %s329, %s331
    %p338 = scmp.eq.s32.totalorder %s27, 1
    %p339 = por %p337, %p338
    %p340 = scmp.ne.s32.totalorder %s331, %s332
    %p341 = scmp.eq.s32.totalorder %s27, 0
    %p342 = por %p340, %p341
    %p343 = scmp.ne.s32.totalorder %s331, %s332
    %p344 = scmp.eq.s32.totalorder %s28, 1
    %p345 = por %p343, %p344
    %p347 = scmp.ne.s32.totalorder %s332, %s346
    %p348 = scmp.eq.s32.totalorder %s28, 0
    %p349 = por %p347, %p348
    %s351 = sadd.s32 %s350, 1
    %p354 = scmp.eq.s32.totalorder %s22, 1
    %p355 = scmp.ne.s32.totalorder %s350, %s352
    %p356 = scmp.eq.s32.totalorder %s22, 0
    %p357 = por %p355, %p356
    %p358 = scmp.ne.s32.totalorder %s350, %s352
    %p359 = scmp.eq.s32.totalorder %s27, 1
    %p360 = por %p358, %p359
    %p361 = scmp.ne.s32.totalorder %s352, %s353
    %p362 = scmp.eq.s32.totalorder %s27, 0
    %p363 = por %p361, %p362
    %p364 = scmp.ne.s32.totalorder %s352, %s353
    %p365 = scmp.eq.s32.totalorder %s28, 1
    %p366 = por %p364, %p365
    %p368 = scmp.ne.s32.totalorder %s353, %s367
    %p369 = scmp.eq.s32.totalorder %s28, 0
    %p370 = por %p368, %p369
    %s372 = sadd.s32 %s371, 1
    %p375 = scmp.eq.s32.totalorder %s22, 1
    %p376 = scmp.ne.s32.totalorder %s371, %s373
    %p377 = scmp.eq.s32.totalorder %s22, 0
    %p378 = por %p376, %p377
    %p379 = scmp.ne.s32.totalorder %s371, %s373
    %p380 = scmp.eq.s32.totalorder %s27, 1
    %p381 = por %p379, %p380
    %p382 = scmp.ne.s32.totalorder %s373, %s374
    %p383 = scmp.eq.s32.totalorder %s27, 0
    %p384 = por %p382, %p383
    %p385 = scmp.ne.s32.totalorder %s373, %s374
    %p386 = scmp.eq.s32.totalorder %s28, 1
    %p387 = por %p385, %p386
    %p389 = scmp.ne.s32.totalorder %s374, %s388
    %p390 = scmp.eq.s32.totalorder %s28, 0
    %p391 = por %p389, %p390
    %s392 = ssub.s32 %s29, %s41
    %s393 = ssub.s32 %s30, %s37
    %s394 = sor.u32 %s392, %s393
    %p395 = scmp.eq.s32.totalorder %s394, 0
    %s397 = sadd.s32 %s396, 1
    %s398 = scalar_select %p395, %s396, %s397
    %p401 = pneg %p395
    %p402 = scmp.eq.s32.totalorder %s22, 1
    %p403 = por %p401, %p402
    %p404 = scmp.ne.s32.totalorder %s396, %s399
    %p405 = scmp.eq.s32.totalorder %s22, 0
    %p406 = por %p404, %p405
    %p407 = scmp.ne.s32.totalorder %s396, %s399
    %p408 = scmp.eq.s32.totalorder %s27, 1
    %p409 = por %p407, %p408
    %p410 = scmp.ne.s32.totalorder %s399, %s400
    %p411 = scmp.eq.s32.totalorder %s27, 0
    %p412 = por %p410, %p411
    %p413 = scmp.ne.s32.totalorder %s399, %s400
    %p414 = scmp.eq.s32.totalorder %s28, 1
    %p415 = por %p413, %p414
    %p417 = scmp.ne.s32.totalorder %s400, %s416
    %p418 = scmp.eq.s32.totalorder %s28, 0
    %p419 = por %p417, %p418
    %p420 = scmp.le.s32.totalorder 1, %s22
    %p421 = scmp.lt.s32.totalorder %s22, 3
    %p422 = pnand %p420, %p421
    %p423 = pneg %p422
    // Predicated region
    $region9: #{tpu_custom_call.1} parent=5 // pred_check
      _
    $region10: #{tpu_custom_call.1} parent=5 // pred_check_branch
      %425 = sbr.rel (%p422) target = $region12
    $region11: #{tpu_custom_call.1} parent=5 // pred_region
      %s426 = ssub.s32 %s22, 1
      // Predicated region
      $region13: #{tpu_custom_call.1} parent=11 // pred_check
        %p427 = pneg %p111
      $region14: #{tpu_custom_call.1} parent=11 // pred_check_branch
        %429 = sbr.rel (%p427) target = $region16
      $region15: #{tpu_custom_call.1} parent=11 // pred_region
        _
      $region16: #{tpu_custom_call.1} parent=11 // pred_fallthru
        _
      // Predicated region
      $region17: #{tpu_custom_call.1} parent=11 // pred_check
        %p430 = pneg %p132
      $region18: #{tpu_custom_call.1} parent=11 // pred_check_branch
        %432 = sbr.rel (%p430) target = $region20
      $region19: #{tpu_custom_call.1} parent=11 // pred_region
        _
      $region20: #{tpu_custom_call.1} parent=11 // pred_fallthru
        _
      // Predicated region
      $region21: #{tpu_custom_call.1} parent=11 // pred_check
        %p433 = pneg %p153
      $region22: #{tpu_custom_call.1} parent=11 // pred_check_branch
        %435 = sbr.rel (%p433) target = $region24
      $region23: #{tpu_custom_call.1} parent=11 // pred_region
        _
      $region24: #{tpu_custom_call.1} parent=11 // pred_fallthru
        _
      // Predicated region
      $region25: #{tpu_custom_call.1} parent=11 // pred_check
        %p436 = pneg %p174
      $region26: #{tpu_custom_call.1} parent=11 // pred_check_branch
        %438 = sbr.rel (%p436) target = $region28
      $region27: #{tpu_custom_call.1} parent=11 // pred_region
        _
      $region28: #{tpu_custom_call.1} parent=11 // pred_fallthru
        _
      // Predicated region
      $region29: #{tpu_custom_call.1} parent=11 // pred_check
        %p439 = pneg %p195
      $region30: #{tpu_custom_call.1} parent=11 // pred_check_branch
        %441 = sbr.rel (%p439) target = $region32
      $region31: #{tpu_custom_call.1} parent=11 // pred_region
        _
      $region32: #{tpu_custom_call.1} parent=11 // pred_fallthru
        _
      // Predicated region
      $region33: #{tpu_custom_call.1} parent=11 // pred_check
        %p442 = pneg %p216
      $region34: #{tpu_custom_call.1} parent=11 // pred_check_branch
        %444 = sbr.rel (%p442) target = $region36
      $region35: #{tpu_custom_call.1} parent=11 // pred_region
        _
      $region36: #{tpu_custom_call.1} parent=11 // pred_fallthru
        _
      // Predicated region
      $region37: #{tpu_custom_call.1} parent=11 // pred_check
        %p445 = pneg %p237
      $region38: #{tpu_custom_call.1} parent=11 // pred_check_branch
        %447 = sbr.rel (%p445) target = $region40
      $region39: #{tpu_custom_call.1} parent=11 // pred_region
        _
      $region40: #{tpu_custom_call.1} parent=11 // pred_fallthru
        _
      // Predicated region
      $region41: #{tpu_custom_call.1} parent=11 // pred_check
        %p448 = pneg %p258
      $region42: #{tpu_custom_call.1} parent=11 // pred_check_branch
        %450 = sbr.rel (%p448) target = $region44
      $region43: #{tpu_custom_call.1} parent=11 // pred_region
        _
      $region44: #{tpu_custom_call.1} parent=11 // pred_fallthru
        _
      // Predicated region
      $region45: #{tpu_custom_call.1} parent=11 // pred_check
        %p451 = pneg %p279
      $region46: #{tpu_custom_call.1} parent=11 // pred_check_branch
        %453 = sbr.rel (%p451) target = $region48
      $region47: #{tpu_custom_call.1} parent=11 // pred_region
        _
      $region48: #{tpu_custom_call.1} parent=11 // pred_fallthru
        _
      // Predicated region
      $region49: #{tpu_custom_call.1} parent=11 // pred_check
        %p454 = pneg %p300
      $region50: #{tpu_custom_call.1} parent=11 // pred_check_branch
        %456 = sbr.rel (%p454) target = $region52
      $region51: #{tpu_custom_call.1} parent=11 // pred_region
        _
      $region52: #{tpu_custom_call.1} parent=11 // pred_fallthru
        _
      // Predicated region
      $region53: #{tpu_custom_call.1} parent=11 // pred_check
        %p457 = pneg %p321
      $region54: #{tpu_custom_call.1} parent=11 // pred_check_branch
        %459 = sbr.rel (%p457) target = $region56
      $region55: #{tpu_custom_call.1} parent=11 // pred_region
        _
      $region56: #{tpu_custom_call.1} parent=11 // pred_fallthru
        _
      // Predicated region
      $region57: #{tpu_custom_call.1} parent=11 // pred_check
        %p460 = pneg %p342
      $region58: #{tpu_custom_call.1} parent=11 // pred_check_branch
        %462 = sbr.rel (%p460) target = $region60
      $region59: #{tpu_custom_call.1} parent=11 // pred_region
        _
      $region60: #{tpu_custom_call.1} parent=11 // pred_fallthru
        _
      // Predicated region
      $region61: #{tpu_custom_call.1} parent=11 // pred_check
        %p463 = pneg %p363
      $region62: #{tpu_custom_call.1} parent=11 // pred_check_branch
        %465 = sbr.rel (%p463) target = $region64
      $region63: #{tpu_custom_call.1} parent=11 // pred_region
        _
      $region64: #{tpu_custom_call.1} parent=11 // pred_fallthru
        _
      // Predicated region
      $region65: #{tpu_custom_call.1} parent=11 // pred_check
        %p466 = pneg %p384
      $region66: #{tpu_custom_call.1} parent=11 // pred_check_branch
        %468 = sbr.rel (%p466) target = $region68
      $region67: #{tpu_custom_call.1} parent=11 // pred_region
        _
      $region68: #{tpu_custom_call.1} parent=11 // pred_fallthru
        _
    $region12: #{tpu_custom_call.1} parent=5 // pred_fallthru
      _
    %p469 = scmp.lt.s32.totalorder %s22, 2
    // Predicated region
    $region69: #{tpu_custom_call.1} parent=5 // pred_check
      %p470 = pneg %p469
    $region70: #{tpu_custom_call.1} parent=5 // pred_check_branch
      %472 = sbr.rel (%p470) target = $region72
    $region71: #{tpu_custom_call.1} parent=5 // pred_region
      // Predicated region
      $region73: #{tpu_custom_call.1} parent=71 // pred_check
        %p473 = pneg %p56
      $region74: #{tpu_custom_call.1} parent=71 // pred_check_branch
        %475 = sbr.rel (%p473) target = $region76
      $region75: #{tpu_custom_call.1} parent=71 // pred_region
        %p476 = scmp.lt.s32.totalorder %s29, 1
        %s477 = scalar_select %p476, %s29, 1
        %p478 = scmp.lt.s32.totalorder %s30, 0
        %s479 = scalar_select %p478, %s30, 0
        %s480 = smul.addr %s479, 3
        %s481 = smul.addr %s477, 3
        %s482 = sadd.s32 %s480, %s481
        %s483 = smul.addr %s482, 8
        %s484 = scalar_lea.vmem %s0, %s483
      $region76: #{tpu_custom_call.1} parent=71 // pred_fallthru
        _
      // Predicated region
      $region77: #{tpu_custom_call.1} parent=71 // pred_check
        %p485 = pneg %p84
      $region78: #{tpu_custom_call.1} parent=71 // pred_check_branch
        %487 = sbr.rel (%p485) target = $region80
      $region79: #{tpu_custom_call.1} parent=71 // pred_region
        %p488 = scmp.lt.s32.totalorder %s29, 1
        %s489 = scalar_select %p488, %s29, 1
        %p490 = scmp.lt.s32.totalorder %s30, 0
        %s491 = scalar_select %p490, %s30, 0
        %s492 = smul.addr %s491, 3
        %s493 = smul.addr %s489, 3
        %s494 = sadd.s32 %s492, %s493
        %s495 = smul.addr %s494, 8
        %s496 = scalar_lea.vmem %s1, %s495
      $region80: #{tpu_custom_call.1} parent=71 // pred_fallthru
        _
    $region72: #{tpu_custom_call.1} parent=5 // pred_fallthru
      _
    %p497 = scmp.le.s32.totalorder 1, %s22
    %p498 = scmp.lt.s32.totalorder %s22, 3
    %p499 = pnand %p497, %p498
    %p500 = pneg %p499
    // Predicated region
    $region81: #{tpu_custom_call.1} parent=5 // pred_check
      _
    $region82: #{tpu_custom_call.1} parent=5 // pred_check_branch
      %502 = sbr.rel (%p499) target = $region84
    $region83: #{tpu_custom_call.1} parent=5 // pred_region
      %s503 = ssub.s32 %s22, 1
      %p504 = scmp.lt.s32.totalorder %s31, 1
      %s505 = scalar_select %p504, %s31, 1
      %p506 = scmp.lt.s32.totalorder %s32, 0
      %s507 = scalar_select %p506, %s32, 0
      %s508 = smul.addr %s507, 3
      %s509 = smul.addr %s505, 3
      %s510 = sadd.s32 %s508, %s509
      %s511 = smul.addr %s510, 8
      %s512 = scalar_lea.vmem %s0, %s511
      %p513 = pneg %p62
      %p514 = pneg %p59
      %p515 = scmp.lt.s32.totalorder %s31, 1
      %s516 = scalar_select %p515, %s31, 1
      %p517 = scmp.lt.s32.totalorder %s32, 0
      %s518 = scalar_select %p517, %s32, 0
      %s519 = smul.addr %s518, 3
      %s520 = smul.addr %s516, 3
      %s521 = sadd.s32 %s519, %s520
      %s522 = smul.addr %s521, 8
      %s523 = scalar_lea.vmem %s1, %s522
      %p524 = pneg %p90
      %p525 = pneg %p87
      %p526 = pneg %p111
      %p527 = pneg %p108
      %p528 = pneg %p132
      %p529 = pneg %p129
      %p530 = pneg %p153
      %p531 = pneg %p150
      %p532 = pneg %p174
      %p533 = pneg %p171
      %p534 = pneg %p195
      %p535 = pneg %p192
      %p536 = pneg %p216
      %p537 = pneg %p213
      %p538 = pneg %p237
      %p539 = pneg %p234
      %p540 = pneg %p258
      %p541 = pneg %p255
      %p542 = pneg %p279
      %p543 = pneg %p276
      %p544 = pneg %p300
      %p545 = pneg %p297
      %p546 = pneg %p321
      %p547 = pneg %p318
      %p548 = pneg %p342
      %p549 = pneg %p339
      %p550 = pneg %p363
      %p551 = pneg %p360
      %p552 = pneg %p384
      %p553 = pneg %p381
      %p554 = pneg %p412
      %p555 = pneg %p409
      %s556 = smul.u32 2, %s32
      %p557 = scmp.lt.s32.totalorder %s31, 1
      %s558 = scalar_select %p557, %s31, 1
      %p559 = scmp.lt.s32.totalorder %s556, 1
      %s560 = scalar_select %p559, %s556, 1
      %s561 = smul.addr %s558, 2
      %s562 = sadd.s32 %s560, %s561
      %s563 = smul.addr %s562, 8
      %s564 = scalar_lea.vmem %s16, %s563
      %p565 = scmp.lt.s32.totalorder %s31, 1
      %s566 = scalar_select %p565, %s31, 1
      %p567 = scmp.lt.s32.totalorder %s32, 0
      %s568 = scalar_select %p567, %s32, 0
      %s569 = smul.addr %s568, 3
      %s570 = smul.addr %s566, 3
      %s571 = sadd.s32 %s569, %s570
      %s572 = smul.addr %s571, 8
      %s573 = scalar_lea.vmem %s0, %s572
      %p574 = scmp.lt.s32.totalorder %s31, 1
      %s575 = scalar_select %p574, %s31, 1
      %p576 = scmp.lt.s32.totalorder %s32, 0
      %s577 = scalar_select %p576, %s32, 0
      %s578 = smul.addr %s577, 3
      %s579 = smul.addr %s575, 3
      %s580 = sadd.s32 %s578, %s579
      %s581 = smul.addr %s580, 8
      %s582 = scalar_lea.vmem %s1, %s581
      %s583 = smul.u32 2, %s32
      %p584 = scmp.lt.s32.totalorder %s31, 1
      %s585 = scalar_select %p584, %s31, 1
      %p586 = scmp.lt.s32.totalorder %s583, 1
      %s587 = scalar_select %p586, %s583, 1
      %s588 = smul.addr %s585, 2
      %s589 = sadd.s32 %s587, %s588
      %s590 = smul.addr %s589, 8
      %s591 = scalar_lea.vmem %s16, %s590
      %s592 = smul.u32 2, %s32
      %v593 = vld [vmem:[%s573] sm:$0xff]
      %v594 = vld [vmem:[%s573 + $0x8] sm:$0xff]
      %v595 = vld [vmem:[%s573 + $0x10] sm:$0x3f]
      %v596 = vld [vmem:[%s582] sm:$0xff]
      %v597 = vld [vmem:[%s582 + $0x8] sm:$0xff]
      %v598 = vld [vmem:[%s582 + $0x10] sm:$0x3f]
      %600 = vset.pattern.permute.xlu0 0
      %601 = vperm.xlu0 %600, %v596
      %v602 = vpop.permute.xlu0 %601
      %605 = vset.pattern.permute.xlu0 0
      %606 = vperm.xlu0 %605, %v597
      %v607 = vpop.permute.xlu0 %606
      %610 = vset.pattern.permute.xlu0 0
      %611 = vperm.xlu0 %610, %v598
      %v612 = vpop.permute.xlu0 %611
      %v614 = vmul.f32 %v593, %v602
      %v615 = vmul.f32 %v594, %v607
      %v616 = vmul.f32 %v595, %v612
      %v617 = vld [vmem:[%s2] sm:$0xf]
      %vm618 = vcmask 31744
      %v620 = vsel %vm618, %v614, 0
      %v623 = vsel %vm618, %v615, 0
      %v626 = vsel %vm618, %v616, 0
      %vm628 = vcmask 1043456
      %v630 = vsel %vm628, %v617, 0
      %632 = vmatpush.msra.mxu0 0.0
      %633 = vmatpush.msra.mxu0 0.0
      %634 = vmatpush.msra.mxu0 0.0
      %635 = vmatpush.msra.mxu0 0.0
      %636 = vmatpush.msra.mxu0 0.0
      %637 = vmatpush.msra.mxu0 0.0
      %638 = vmatpush.msra.mxu0 0.0
      %639 = vmatpush.msra.mxu0 0.0
      %640 = vmatpush.msra.mxu0 0.0
      %641 = vmatpush.msra.mxu0 0.0
      %642 = vmatpush.msra.mxu0 0.0
      %643 = vmatpush.msra.mxu0 0.0
      %644 = vmatpush.msra.mxu0 0.0
      %645 = vmatpush.msra.mxu0 0.0
      %646 = vmatpush.msra.mxu0 0.0
      %647 = vmatpush.msra.mxu0 %v630
      %648 = vmatmul.f32.gmra.mxu0 %v620
      %v649 = vpop.f32.mrf.mxu0
      %v650 = vadd.f32 0.0, %v649
      %651 = vmatmul.f32.gmra.mxu0 %v623
      %v652 = vpop.f32.mrf.mxu0
      %v653 = vadd.f32 0.0, %v652
      %654 = vmatmul.f32.gmra.mxu0 %v626
      %v655 = vpop.f32.mrf.mxu0
      %v656 = vadd.f32 0.0, %v655
      %657 = vdwg.mxu0
      %vm661 = vcmask 1046528
      %v662 = vrot.slane %v650, 1
      %v663 = vrot.slane %v653, 1
      %v664 = vsel %vm661, %v662, %v663
      %v665 = vrot.slane %v656, 1
      %v666 = vsel %vm661, %v663, %v665
      %667 = vrot.lane.b32.xlu0 %v664, 96
      %v668 = vpop.permute.xlu0 %667
      %669 = vrot.lane.b32.xlu0 %v666, 96
      %v670 = vpop.permute.xlu0 %669
      %671 = vrot.lane.b32.xlu0 %v665, 96
      %v672 = vpop.permute.xlu0 %671
      %v676 = vadd.f32 %v650, %v668
      %v677 = vadd.f32 %v653, %v670
      %v678 = vadd.f32 %v656, %v672
      %vm679 = vcmask 1045504
      %v680 = vrot.slane %v650, 2
      %v681 = vrot.slane %v653, 2
      %v682 = vsel %vm679, %v680, %v681
      %v683 = vrot.slane %v656, 2
      %v684 = vsel %vm679, %v681, %v683
      %685 = vrot.lane.b32.xlu0 %v682, 64
      %v686 = vpop.permute.xlu0 %685
      %687 = vrot.lane.b32.xlu0 %v684, 64
      %v688 = vpop.permute.xlu0 %687
      %689 = vrot.lane.b32.xlu0 %v683, 64
      %v690 = vpop.permute.xlu0 %689
      %v694 = vadd.f32 %v676, %v686
      %v695 = vadd.f32 %v677, %v688
      %v696 = vadd.f32 %v678, %v690
      %v697 = vld [vmem:[%s3] sm:$0x1]
      %v699 = vperm.slane %v697, 0
      %v701 = vadd.f32 %v694, %v699
      %v702 = vadd.f32 %v695, %v699
      %v703 = vadd.f32 %v696, %v699
      %vm704 = vcmask 261120
      %v705 = vsel %vm704, %v701, 0.0
      %706 = vadd.xlane.f32.xlu0 %v705
      %v707 = vpop.xlane.xlu0 %706
      %v708 = vsel %vm704, %v702, 0.0
      %709 = vadd.xlane.f32.xlu0 %v708
      %v710 = vpop.xlane.xlu0 %709
      %vm711 = vcmask 257024
      %v712 = vsel %vm711, %v703, 0.0
      %713 = vadd.xlane.f32.xlu0 %v712
      %v714 = vpop.xlane.xlu0 %713
      %v715 = vmul.f32 %v701, %v701
      %v716 = vmul.f32 %v702, %v702
      %v717 = vmul.f32 %v703, %v703
      %v718 = vsel %vm704, %v715, 0.0
      %719 = vadd.xlane.f32.xlu0 %v718
      %v720 = vpop.xlane.xlu0 %719
      %v721 = vsel %vm704, %v716, 0.0
      %722 = vadd.xlane.f32.xlu0 %v721
      %v723 = vpop.xlane.xlu0 %722
      %v724 = vsel %vm711, %v717, 0.0
      %725 = vadd.xlane.f32.xlu0 %v724
      %v726 = vpop.xlane.xlu0 %725
      %v727 = vmul.f32 %v707, 0.03125
      %v728 = vmul.f32 %v710, 0.03125
      %v729 = vmul.f32 %v714, 0.03125
      %v730 = vmul.f32 %v720, 0.03125
      %v731 = vmul.f32 %v723, 0.03125
      %v732 = vmul.f32 %v726, 0.03125
      %v733 = vmul.f32 %v727, %v727
      %v734 = vmul.f32 %v728, %v728
      %v735 = vmul.f32 %v729, %v729
      %v736 = vsub.f32 %v730, %v733
      %v737 = vsub.f32 %v731, %v734
      %v738 = vsub.f32 %v732, %v735
      %v739 = vmax.f32 %v736, 0.0
      %v740 = vmax.f32 %v737, 0.0
      %v741 = vmax.f32 %v738, 0.0
      %v742 = vsub.f32 %v701, %v727
      %v743 = vsub.f32 %v702, %v728
      %v744 = vsub.f32 %v703, %v729
      %v745 = vadd.f32 %v739, 1e-05
      %v746 = vadd.f32 %v740, 1e-05
      %v747 = vadd.f32 %v741, 1e-05
      %v748 = vrsqrt.pop %v745
      %v749 = vmul.f32 %v748, %v745
      %v750 = vmul.f32 %v749, %v748
      %v751 = vmul.f32 0.5, %v750
      %v752 = vsub.f32 1.5, %v751
      %v753 = vmul.f32 %v748, %v752
      %vm754 = vweird.f32 %v745
      %vm755 = vweird.f32 %v748
      %vm756 = vmor %vm754, %vm755
      %v757 = vsel %vm756, %v748, %v753
      %v758 = vrsqrt.pop %v746
      %v759 = vmul.f32 %v758, %v746
      %v760 = vmul.f32 %v759, %v758
      %v761 = vmul.f32 0.5, %v760
      %v762 = vsub.f32 1.5, %v761
      %v763 = vmul.f32 %v758, %v762
      %vm764 = vweird.f32 %v746
      %vm765 = vweird.f32 %v758
      %vm766 = vmor %vm764, %vm765
      %v767 = vsel %vm766, %v758, %v763
      %v768 = vrsqrt.pop %v747
      %v769 = vmul.f32 %v768, %v747
      %v770 = vmul.f32 %v769, %v768
      %v771 = vmul.f32 0.5, %v770
      %v772 = vsub.f32 1.5, %v771
      %v773 = vmul.f32 %v768, %v772
      %vm774 = vweird.f32 %v747
      %vm775 = vweird.f32 %v768
      %vm776 = vmor %vm774, %vm775
      %v777 = vsel %vm776, %v768, %v773
      %v778 = vmul.f32 %v742, %v757
      %v779 = vmul.f32 %v743, %v767
      %v780 = vmul.f32 %v744, %v777
      %v781 = vld [vmem:[%s4] sm:$0x1]
      %v783 = vperm.slane %v781, 0
      %v785 = vmul.f32 %v778, %v783
      %v786 = vmul.f32 %v779, %v783
      %v787 = vmul.f32 %v780, %v783
      %v788 = vld [vmem:[%s5] sm:$0x1]
      %v790 = vperm.slane %v788, 0
      %v792 = vadd.f32 %v785, %v790
      %v793 = vadd.f32 %v786, %v790
      %v794 = vadd.f32 %v787, %v790
      %v795 = vmax.f32 %v792, 0.0
      %v796 = vmax.f32 %v793, 0.0
      %v797 = vmax.f32 %v794, 0.0
      %v798 = vrot.slane %v602, 1
      %v799 = vrot.slane %v607, 1
      %v800 = vsel %vm661, %v798, %v799
      %v801 = vrot.slane %v612, 1
      %v802 = vsel %vm661, %v799, %v801
      %v806 = vmul.f32 %v795, %v800
      %v807 = vmul.f32 %v796, %v802
      %v808 = vmul.f32 %v797, %v801
      %v809 = vld [vmem:[%s6] sm:$0xff]
      %v810 = vld [vmem:[%s6 + $0x8] sm:$0xff]
      %v811 = vld [vmem:[%s6 + $0x10] sm:$0xff]
      %v812 = vld [vmem:[%s6 + $0x18] sm:$0xff]
      %v814 = vsel %vm704, %v806, 0
      %v817 = vsel %vm704, %v807, 0
      %v820 = vsel %vm704, %v808, 0
      %822 = vmatpush.msra.mxu0 0.0
      %823 = vmatpush.msra.mxu0 0.0
      %824 = vmatpush.msra.mxu0 0.0
      %825 = vmatpush.msra.mxu0 0.0
      %826 = vmatpush.msra.mxu0 0.0
      %827 = vmatpush.msra.mxu0 0.0
      %828 = vmatpush.msra.mxu0 0.0
      %829 = vmatpush.msra.mxu0 0.0
      %830 = vmatpush.msra.mxu0 0.0
      %831 = vmatpush.msra.mxu0 0.0
      %832 = vmatpush.msra.mxu0 0.0
      %833 = vmatpush.msra.mxu0 0.0
      %834 = vmatpush.msra.mxu0 %v812
      %835 = vmatpush.msra.mxu0 %v811
      %836 = vmatpush.msra.mxu0 %v810
      %837 = vmatpush.msra.mxu0 %v809
      %838 = vmatmul.f32.gmra.mxu0 %v814
      %v839 = vpop.f32.mrf.mxu0
      %v840 = vadd.f32 0.0, %v839
      %841 = vmatmul.f32.gmra.mxu0 %v817
      %v842 = vpop.f32.mrf.mxu0
      %v843 = vadd.f32 0.0, %v842
      %844 = vmatmul.f32.gmra.mxu0 %v820
      %v845 = vpop.f32.mrf.mxu0
      %v846 = vadd.f32 0.0, %v845
      %847 = vdwg.mxu0
      %v851 = vrot.slane %v840, 1
      %v852 = vrot.slane %v843, 1
      %v853 = vsel %vm661, %v851, %v852
      %v854 = vrot.slane %v846, 1
      %v855 = vsel %vm661, %v852, %v854
      %856 = vrot.lane.b32.xlu0 %v853, 96
      %v857 = vpop.permute.xlu0 %856
      %858 = vrot.lane.b32.xlu0 %v855, 96
      %v859 = vpop.permute.xlu0 %858
      %860 = vrot.lane.b32.xlu0 %v854, 96
      %v861 = vpop.permute.xlu0 %860
      %v865 = vadd.f32 %v840, %v857
      %v866 = vadd.f32 %v843, %v859
      %v867 = vadd.f32 %v846, %v861
      %v868 = vrot.slane %v840, 2
      %v869 = vrot.slane %v843, 2
      %v870 = vsel %vm679, %v868, %v869
      %v871 = vrot.slane %v846, 2
      %v872 = vsel %vm679, %v869, %v871
      %873 = vrot.lane.b32.xlu0 %v870, 64
      %v874 = vpop.permute.xlu0 %873
      %875 = vrot.lane.b32.xlu0 %v872, 64
      %v876 = vpop.permute.xlu0 %875
      %877 = vrot.lane.b32.xlu0 %v871, 64
      %v878 = vpop.permute.xlu0 %877
      %v882 = vadd.f32 %v865, %v874
      %v883 = vadd.f32 %v866, %v876
      %v884 = vadd.f32 %v867, %v878
      %v885 = vld [vmem:[%s7] sm:$0x1]
      %v887 = vperm.slane %v885, 0
      %v889 = vadd.f32 %v882, %v887
      %v890 = vadd.f32 %v883, %v887
      %v891 = vadd.f32 %v884, %v887
      %v892 = vsel %vm704, %v889, 0.0
      %893 = vadd.xlane.f32.xlu0 %v892
      %v894 = vpop.xlane.xlu0 %893
      %v895 = vsel %vm704, %v890, 0.0
      %896 = vadd.xlane.f32.xlu0 %v895
      %v897 = vpop.xlane.xlu0 %896
      %vm898 = vcmask 254976
      %v899 = vsel %vm898, %v891, 0.0
      %900 = vadd.xlane.f32.xlu0 %v899
      %v901 = vpop.xlane.xlu0 %900
      %v902 = vmul.f32 %v889, %v889
      %v903 = vmul.f32 %v890, %v890
      %v904 = vmul.f32 %v891, %v891
      %v905 = vsel %vm704, %v902, 0.0
      %906 = vadd.xlane.f32.xlu0 %v905
      %v907 = vpop.xlane.xlu0 %906
      %v908 = vsel %vm704, %v903, 0.0
      %909 = vadd.xlane.f32.xlu0 %v908
      %v910 = vpop.xlane.xlu0 %909
      %v911 = vsel %vm898, %v904, 0.0
      %912 = vadd.xlane.f32.xlu0 %v911
      %v913 = vpop.xlane.xlu0 %912
      %v914 = vmul.f32 %v894, 0.03125
      %v915 = vmul.f32 %v897, 0.03125
      %v916 = vmul.f32 %v901, 0.03125
      %v917 = vmul.f32 %v907, 0.03125
      %v918 = vmul.f32 %v910, 0.03125
      %v919 = vmul.f32 %v913, 0.03125
      %v920 = vmul.f32 %v914, %v914
      %v921 = vmul.f32 %v915, %v915
      %v922 = vmul.f32 %v916, %v916
      %v923 = vsub.f32 %v917, %v920
      %v924 = vsub.f32 %v918, %v921
      %v925 = vsub.f32 %v919, %v922
      %v926 = vmax.f32 %v923, 0.0
      %v927 = vmax.f32 %v924, 0.0
      %v928 = vmax.f32 %v925, 0.0
      %v929 = vsub.f32 %v889, %v914
      %v930 = vsub.f32 %v890, %v915
      %v931 = vsub.f32 %v891, %v916
      %v932 = vadd.f32 %v926, 1e-05
      %v933 = vadd.f32 %v927, 1e-05
      %v934 = vadd.f32 %v928, 1e-05
      %v935 = vrsqrt.pop %v932
      %v936 = vmul.f32 %v935, %v932
      %v937 = vmul.f32 %v936, %v935
      %v938 = vmul.f32 0.5, %v937
      %v939 = vsub.f32 1.5, %v938
      %v940 = vmul.f32 %v935, %v939
      %vm941 = vweird.f32 %v932
      %vm942 = vweird.f32 %v935
      %vm943 = vmor %vm941, %vm942
      %v944 = vsel %vm943, %v935, %v940
      %v945 = vrsqrt.pop %v933
      %v946 = vmul.f32 %v945, %v933
      %v947 = vmul.f32 %v946, %v945
      %v948 = vmul.f32 0.5, %v947
      %v949 = vsub.f32 1.5, %v948
      %v950 = vmul.f32 %v945, %v949
      %vm951 = vweird.f32 %v933
      %vm952 = vweird.f32 %v945
      %vm953 = vmor %vm951, %vm952
      %v954 = vsel %vm953, %v945, %v950
      %v955 = vrsqrt.pop %v934
      %v956 = vmul.f32 %v955, %v934
      %v957 = vmul.f32 %v956, %v955
      %v958 = vmul.f32 0.5, %v957
      %v959 = vsub.f32 1.5, %v958
      %v960 = vmul.f32 %v955, %v959
      %vm961 = vweird.f32 %v934
      %vm962 = vweird.f32 %v955
      %vm963 = vmor %vm961, %vm962
      %v964 = vsel %vm963, %v955, %v960
      %v965 = vmul.f32 %v929, %v944
      %v966 = vmul.f32 %v930, %v954
      %v967 = vmul.f32 %v931, %v964
      %v968 = vld [vmem:[%s8] sm:$0x1]
      %v970 = vperm.slane %v968, 0
      %v972 = vmul.f32 %v965, %v970
      %v973 = vmul.f32 %v966, %v970
      %v974 = vmul.f32 %v967, %v970
      %v975 = vld [vmem:[%s9] sm:$0x1]
      %v977 = vperm.slane %v975, 0
      %v979 = vadd.f32 %v972, %v977
      %v980 = vadd.f32 %v973, %v977
      %v981 = vadd.f32 %v974, %v977
      %v982 = vmax.f32 %v979, 0.0
      %v983 = vmax.f32 %v980, 0.0
      %v984 = vmax.f32 %v981, 0.0
      %v985 = vrot.slane %v602, 2
      %v986 = vrot.slane %v607, 2
      %v987 = vsel %vm679, %v985, %v986
      %v988 = vrot.slane %v612, 2
      %v989 = vsel %vm679, %v986, %v988
      %v993 = vmul.f32 %v982, %v987
      %v994 = vmul.f32 %v983, %v989
      %v995 = vmul.f32 %v984, %v988
      %v996 = vld [vmem:[%s10] sm:$0xff]
      %v997 = vld [vmem:[%s10 + $0x8] sm:$0xff]
      %v998 = vld [vmem:[%s10 + $0x10] sm:$0xff]
      %v999 = vld [vmem:[%s10 + $0x18] sm:$0xff]
      %v1001 = vsel %vm704, %v993, 0
      %v1004 = vsel %vm704, %v994, 0
      %v1007 = vsel %vm704, %v995, 0
      %1009 = vmatpush.msra.mxu0 0.0
      %1010 = vmatpush.msra.mxu0 0.0
      %1011 = vmatpush.msra.mxu0 0.0
      %1012 = vmatpush.msra.mxu0 0.0
      %1013 = vmatpush.msra.mxu0 0.0
      %1014 = vmatpush.msra.mxu0 0.0
      %1015 = vmatpush.msra.mxu0 0.0
      %1016 = vmatpush.msra.mxu0 0.0
      %1017 = vmatpush.msra.mxu0 0.0
      %1018 = vmatpush.msra.mxu0 0.0
      %1019 = vmatpush.msra.mxu0 0.0
      %1020 = vmatpush.msra.mxu0 0.0
      %1021 = vmatpush.msra.mxu0 %v999
      %1022 = vmatpush.msra.mxu0 %v998
      %1023 = vmatpush.msra.mxu0 %v997
      %1024 = vmatpush.msra.mxu0 %v996
      %1025 = vmatmul.f32.gmra.mxu0 %v1001
      %v1026 = vpop.f32.mrf.mxu0
      %v1027 = vadd.f32 0.0, %v1026
      %1028 = vmatmul.f32.gmra.mxu0 %v1004
      %v1029 = vpop.f32.mrf.mxu0
      %v1030 = vadd.f32 0.0, %v1029
      %1031 = vmatmul.f32.gmra.mxu0 %v1007
      %v1032 = vpop.f32.mrf.mxu0
      %v1033 = vadd.f32 0.0, %v1032
      %1034 = vdwg.mxu0
      %v1038 = vrot.slane %v1027, 1
      %v1039 = vrot.slane %v1030, 1
      %v1040 = vsel %vm661, %v1038, %v1039
      %v1041 = vrot.slane %v1033, 1
      %v1042 = vsel %vm661, %v1039, %v1041
      %1043 = vrot.lane.b32.xlu0 %v1040, 96
      %v1044 = vpop.permute.xlu0 %1043
      %1045 = vrot.lane.b32.xlu0 %v1042, 96
      %v1046 = vpop.permute.xlu0 %1045
      %v1049 = vadd.f32 %v1027, %v1044
      %v1050 = vadd.f32 %v1030, %v1046
      %v1051 = vrot.slane %v1027, 2
      %v1052 = vrot.slane %v1030, 2
      %v1053 = vsel %vm679, %v1051, %v1052
      %v1054 = vrot.slane %v1033, 2
      %v1055 = vsel %vm679, %v1052, %v1054
      %1056 = vrot.lane.b32.xlu0 %v1053, 64
      %v1057 = vpop.permute.xlu0 %1056
      %1058 = vrot.lane.b32.xlu0 %v1055, 64
      %v1059 = vpop.permute.xlu0 %1058
      %v1062 = vadd.f32 %v1049, %v1057
      %v1063 = vadd.f32 %v1050, %v1059
      %v1064 = vld [vmem:[%s11] sm:$0x1]
      %v1066 = vperm.slane %v1064, 0
      %v1068 = vadd.f32 %v1062, %v1066
      %v1069 = vadd.f32 %v1063, %v1066
      %v1070 = vsel %vm704, %v1068, 0.0
      %1071 = vadd.xlane.f32.xlu0 %v1070
      %v1072 = vpop.xlane.xlu0 %1071
      %v1073 = vsel %vm704, %v1069, 0.0
      %1074 = vadd.xlane.f32.xlu0 %v1073
      %v1075 = vpop.xlane.xlu0 %1074
      %v1076 = vmul.f32 %v1068, %v1068
      %v1077 = vmul.f32 %v1069, %v1069
      %v1078 = vsel %vm704, %v1076, 0.0
      %1079 = vadd.xlane.f32.xlu0 %v1078
      %v1080 = vpop.xlane.xlu0 %1079
      %v1081 = vsel %vm704, %v1077, 0.0
      %1082 = vadd.xlane.f32.xlu0 %v1081
      %v1083 = vpop.xlane.xlu0 %1082
      %v1084 = vmul.f32 %v1072, 0.03125
      %v1085 = vmul.f32 %v1075, 0.03125
      %v1086 = vmul.f32 %v1080, 0.03125
      %v1087 = vmul.f32 %v1083, 0.03125
      %v1088 = vmul.f32 %v1084, %v1084
      %v1089 = vmul.f32 %v1085, %v1085
      %v1090 = vsub.f32 %v1086, %v1088
      %v1091 = vsub.f32 %v1087, %v1089
      %v1092 = vmax.f32 %v1090, 0.0
      %v1093 = vmax.f32 %v1091, 0.0
      %v1094 = vsub.f32 %v1068, %v1084
      %v1095 = vsub.f32 %v1069, %v1085
      %v1096 = vadd.f32 %v1092, 1e-05
      %v1097 = vadd.f32 %v1093, 1e-05
      %v1098 = vrsqrt.pop %v1096
      %v1099 = vmul.f32 %v1098, %v1096
      %v1100 = vmul.f32 %v1099, %v1098
      %v1101 = vmul.f32 0.5, %v1100
      %v1102 = vsub.f32 1.5, %v1101
      %v1103 = vmul.f32 %v1098, %v1102
      %vm1104 = vweird.f32 %v1096
      %vm1105 = vweird.f32 %v1098
      %vm1106 = vmor %vm1104, %vm1105
      %v1107 = vsel %vm1106, %v1098, %v1103
      %v1108 = vrsqrt.pop %v1097
      %v1109 = vmul.f32 %v1108, %v1097
      %v1110 = vmul.f32 %v1109, %v1108
      %v1111 = vmul.f32 0.5, %v1110
      %v1112 = vsub.f32 1.5, %v1111
      %v1113 = vmul.f32 %v1108, %v1112
      %vm1114 = vweird.f32 %v1097
      %vm1115 = vweird.f32 %v1108
      %vm1116 = vmor %vm1114, %vm1115
      %v1117 = vsel %vm1116, %v1108, %v1113
      %v1118 = vmul.f32 %v1094, %v1107
      %v1119 = vmul.f32 %v1095, %v1117
      %v1120 = vld [vmem:[%s12] sm:$0x1]
      %v1122 = vperm.slane %v1120, 0
      %v1124 = vmul.f32 %v1118, %v1122
      %v1125 = vmul.f32 %v1119, %v1122
      %v1126 = vld [vmem:[%s13] sm:$0x1]
      %v1128 = vperm.slane %v1126, 0
      %v1130 = vadd.f32 %v1124, %v1128
      %v1131 = vadd.f32 %v1125, %v1128
      %v1132 = vmax.f32 %v1130, 0.0
      %v1133 = vmax.f32 %v1131, 0.0
      %vm1134 = vcmask 1044480
      %v1135 = vrot.slane %v602, 3
      %v1136 = vrot.slane %v607, 3
      %v1137 = vsel %vm1134, %v1135, %v1136
      %v1138 = vrot.slane %v612, 3
      %v1139 = vsel %vm1134, %v1136, %v1138
      %v1142 = vmul.f32 %v1132, %v1137
      %v1143 = vmul.f32 %v1133, %v1139
      %v1144 = vld [vmem:[%s14] sm:$0xff]
      %v1145 = vld [vmem:[%s14 + $0x8] sm:$0xff]
      %v1146 = vld [vmem:[%s14 + $0x10] sm:$0xff]
      %v1147 = vld [vmem:[%s14 + $0x18] sm:$0xff]
      %v1148 = vld [vmem:[%s15] sm:$0x1]
      %v1150 = vperm.slane %v1148, 0
      %v1153 = vsel %vm704, %v1142, 0
      %v1156 = vsel %vm704, %v1143, 0
      %1158 = vmatpush.msra.mxu0 0.0
      %1159 = vmatpush.msra.mxu0 0.0
      %1160 = vmatpush.msra.mxu0 0.0
      %1161 = vmatpush.msra.mxu0 0.0
      %1162 = vmatpush.msra.mxu0 0.0
      %1163 = vmatpush.msra.mxu0 0.0
      %1164 = vmatpush.msra.mxu0 0.0
      %1165 = vmatpush.msra.mxu0 0.0
      %1166 = vmatpush.msra.mxu0 0.0
      %1167 = vmatpush.msra.mxu0 0.0
      %1168 = vmatpush.msra.mxu0 0.0
      %1169 = vmatpush.msra.mxu0 0.0
      %1170 = vmatpush.msra.mxu0 %v1147
      %1171 = vmatpush.msra.mxu0 %v1146
      %1172 = vmatpush.msra.mxu0 %v1145
      %1173 = vmatpush.msra.mxu0 %v1144
      %1174 = vmatmul.f32.gmra.mxu0 %v1153
      %v1175 = vpop.f32.mrf.mxu0
      %v1176 = vadd.f32 %v1150, %v1175
      %1177 = vmatmul.f32.gmra.mxu0 %v1156
      %v1178 = vpop.f32.mrf.mxu0
      %v1179 = vadd.f32 %v1150, %v1178
      %1180 = vdwg.mxu0
      %vm1183 = vcmask 1042432
      %v1184 = vrot.slane %v1176, 5
      %v1185 = vrot.slane %v1179, 5
      %v1186 = vsel %vm1183, %v1184, %v1185
      %v1190 = vadd.f32 %v593, %v1184
      %v1191 = vadd.f32 %v594, %v1186
      %v1192 = vadd.f32 %v595, %v1185
      %v1193 = vmul.f32 %v1190, %v602
      %v1194 = vmul.f32 %v1191, %v607
      %v1195 = vmul.f32 %v1192, %v612
      %vm1196 = vcmask 31747
      %1197 = vst.msk [vmem:[%s591 - $0x3] sm:$0xf8] %vm1196, %v1193
      %1198 = vst.msk [vmem:[%s591 + $0x5] sm:$0xff] %vm618, %v1194
      %vm1199 = vcmask 26624
      %1200 = vst.msk [vmem:[%s591 + $0xd] sm:$0x7] %vm1199, %v1195
      %s1201 = smul.u32 2, %s32
      %p1202 = scmp.lt.s32.totalorder %s31, 1
      %s1203 = scalar_select %p1202, %s31, 1
      %p1204 = scmp.lt.s32.totalorder %s1201, 1
      %s1205 = scalar_select %p1204, %s1201, 1
      %s1206 = smul.addr %s1203, 2
      %s1207 = sadd.s32 %s1205, %s1206
      %s1208 = smul.addr %s1207, 8
      %s1209 = scalar_lea.vmem %s16, %s1208
      // Predicated region
      $region85: #{tpu_custom_call.1} parent=83 // pred_check
        %p1210 = pneg %p409
      $region86: #{tpu_custom_call.1} parent=83 // pred_check_branch
        %1212 = sbr.rel (%p1210) target = $region88
      $region87: #{tpu_custom_call.1} parent=83 // pred_region
        %s1213 = smul.u32 2, %s32
      $region88: #{tpu_custom_call.1} parent=83 // pred_fallthru
        _
    $region84: #{tpu_custom_call.1} parent=5 // pred_fallthru
      _
    %p1214 = scmp.le.s32.totalorder 2, %s22
    // Predicated region
    $region89: #{tpu_custom_call.1} parent=5 // pred_check
      %p1215 = pneg %p1214
    $region90: #{tpu_custom_call.1} parent=5 // pred_check_branch
      %1217 = sbr.rel (%p1215) target = $region92
    $region91: #{tpu_custom_call.1} parent=5 // pred_region
      %s1218 = ssub.s32 %s22, 2
      // Predicated region
      $region93: #{tpu_custom_call.1} parent=91 // pred_check
        %p1219 = pneg %p415
      $region94: #{tpu_custom_call.1} parent=91 // pred_check_branch
        %1221 = sbr.rel (%p1219) target = $region96
      $region95: #{tpu_custom_call.1} parent=91 // pred_region
        %s1222 = smul.u32 2, %s34
        %p1223 = scmp.lt.s32.totalorder %s33, 1
        %s1224 = scalar_select %p1223, %s33, 1
        %p1225 = scmp.lt.s32.totalorder %s1222, 1
        %s1226 = scalar_select %p1225, %s1222, 1
        %s1227 = smul.addr %s1224, 2
        %s1228 = sadd.s32 %s1226, %s1227
        %s1229 = smul.addr %s1228, 8
        %s1230 = scalar_lea.vmem %s16, %s1229
      $region96: #{tpu_custom_call.1} parent=91 // pred_fallthru
        _
    $region92: #{tpu_custom_call.1} parent=5 // pred_fallthru
      _
  $region6: #{tpu_custom_call.1} parent=0 // loop_footer
    %s26 = sadd.s32 1, %s22
  $region7: #{tpu_custom_call.1} parent=0 // loop_footer_branch
    %21 = sbr.rel target = $region3
  $region8: #{tpu_custom_call.1} parent=0 // loop_exit
    _

</llo_original>
